<compile_context>
chip_gen: v5e
topology: v5e:2x2
jax: 0.10.0
libtpu: 0.0.40
codegen_flags: <defaults>
</compile_context>

<pallas_src>
import functools

import jax
import jax.numpy as jnp
from jax.experimental import pallas as pl
from jax.experimental.pallas import tpu as pltpu


def _fused_conv2_kernel(col1_ref, w1_ref, b1_ref, a1_ref,
                        w2_ref, b2_ref, a2_ref, o_ref, inter_ref, *,
                        ho1, wo1, kh, kw, m1, cout):
    """One image per grid step.

    col1_ref : (1, M1p, K1)         bf16  layer-1 im2col (K1 = kh*kw*Cin), built in glue
    w1_ref   : (K1, C1p)            bf16  layer-1 weights, Cout padded to 128 lanes
    b1_ref, a1_ref : (1, C1p)       f32   layer-1 bias / PReLU slope
    w2_ref   : (kh*kw, C1p, C2p)    bf16  layer-2 per-tap weight matrices
    b2_ref, a2_ref : (1, C2p)       f32   layer-2 bias / PReLU slope
    o_ref    : (1, M2, Cout)        f32   only the real output channels hit HBM
    inter_ref: (ho1+2, wo1+2, C1p)  bf16  VMEM-resident zero-padded intermediate
    """
    c1p = w1_ref.shape[-1]
    c2p = w2_ref.shape[-1]
    m2 = ho1 * wo1

    # ---- layer 1: ONE K-folded MXU matmul + bias + PReLU (f32 epilogue) ---------------
    acc1 = jnp.dot(col1_ref[0], w1_ref[...], preferred_element_type=jnp.float32)
    acc1 = acc1 + b1_ref[...]
    y1 = jnp.where(acc1 >= 0.0, acc1, a1_ref[...] * acc1)

    # Zero-padded (padding=1) intermediate kept entirely in VMEM, cast to bf16 ONCE here
    # (not per tap).  Padded channels are exactly zero (zero weights + zero bias ->
    # PReLU(0)=0), so they contribute nothing to layer 2.
    inter_ref[...] = jnp.zeros(inter_ref.shape, inter_ref.dtype)
    inter_ref[1:1 + ho1, 1:1 + wo1, :] = (
        y1[:m1].reshape(ho1, wo1, c1p).astype(inter_ref.dtype))

    # ---- layer 2: 9-tap implicit GEMM, each tap contracts the full 128-lane K ---------
    # TODO(synk): for Cout << 128, stage the 9 taps into a (M2, 9*Cout) bf16 im2col
    # scratch and do a single K=9*Cout matmul to avoid contracting zero-padded K lanes.
    acc2 = jnp.zeros((m2, c2p), jnp.float32)
    for i in range(kh):
        for j in range(kw):
            xt = inter_ref[i:i + ho1, j:j + wo1, :].reshape(m2, c1p)
            acc2 = acc2 + jnp.dot(xt, w2_ref[i * kw + j],
                                  preferred_element_type=jnp.float32)
    acc2 = acc2 + b2_ref[...]
    y2 = jnp.where(acc2 >= 0.0, acc2, a2_ref[...] * acc2)

    # Narrow (real-Cout) store: HBM writeback is exactly the needed bytes, not 16x.
    o_ref[0] = y2[:, :cout].astype(o_ref.dtype)


def conv2_forward(x_nchw, params, *, stride=2, padding=1):
    """Pallas equivalent of Conv2.forward: NCHW f32 in -> NCHW f32 out."""
    w1, b1, a1 = params["w1"], params["b1"], params["a1"]
    w2, b2, a2 = params["w2"], params["b2"], params["a2"]
    N, Cin, H, W = x_nchw.shape
    Cout, _, KH, KW = w1.shape
    s, p = stride, padding
    Ho1 = (H + 2 * p - KH) // s + 1
    Wo1 = (W + 2 * p - KW) // s + 1
    Ho2, Wo2 = Ho1, Wo1                    # conv2 is k=3, s=1, p=1
    M1, M2 = Ho1 * Wo1, Ho2 * Wo2
    K1 = KH * KW * Cin

    # ---- cheap XLA glue: layer-1 im2col in bf16 (K-folded last dim) -------------------
    # At stride 2 this is ~(9/4)x the input pixels in bf16 ~= 1.1x the f32 input bytes,
    # and it buys a single K=K1 MXU matmul per image in the kernel.
    x_nhwc = jnp.transpose(x_nchw, (0, 2, 3, 1))
    xp = jnp.pad(x_nhwc, ((0, 0), (p, p), (p, p), (0, 0)))
    taps = [xp[:, i:i + (Ho1 - 1) * s + 1:s, j:j + (Wo1 - 1) * s + 1:s, :]
            for i in range(KH) for j in range(KW)]
    col1 = jnp.concatenate(taps, axis=-1)                        # (N, Ho1, Wo1, K1)
    col1 = col1.reshape(N, M1, K1).astype(jnp.bfloat16)
    M1p = pl.cdiv(M1, 8) * 8
    if M1p != M1:
        col1 = jnp.pad(col1, ((0, 0), (0, M1p - M1), (0, 0)))

    # ---- weights / bias / PReLU slopes in kernel layout --------------------------------
    C1p = pl.cdiv(Cout, 128) * 128     # lane width of the VMEM-resident intermediate
    C2p = C1p
    # layer-1: (Cout, Cin, KH, KW) -> (K1, C1p), k = (i*KW + j)*Cin + ci (matches col1)
    w1m = jnp.transpose(w1, (2, 3, 1, 0)).reshape(K1, Cout)
    w1m = jnp.pad(w1m, ((0, 0), (0, C1p - Cout))).astype(jnp.bfloat16)
    # layer-2: (Cout, Cout, 3, 3) -> (9, C1p, C2p) per-tap matrices
    w2m = jnp.transpose(w2, (2, 3, 1, 0)).reshape(KH * KW, Cout, Cout)
    w2m = jnp.pad(w2m, ((0, 0), (0, C1p - Cout), (0, C2p - Cout))).astype(jnp.bfloat16)
    b1p = jnp.pad(b1.reshape(1, Cout), ((0, 0), (0, C1p - Cout)))
    a1p = jnp.pad(a1.reshape(1, Cout), ((0, 0), (0, C1p - Cout)))
    b2p = jnp.pad(b2.reshape(1, Cout), ((0, 0), (0, C2p - Cout)))
    a2p = jnp.pad(a2.reshape(1, Cout), ((0, 0), (0, C2p - Cout)))

    # Whole image per grid step: <1 MiB of VMEM at these sizes (well under any limit).
    # TODO(synk): for large H*W, add a spatial row-block grid axis (layer-1 halo recompute
    # per block), mark it "parallel" for v7x megacore at small batch, re-derive the tile
    # size / vmem_limit_bytes for v7x's 64 MiB, and move acc2 into a VMEM scratch to bound
    # vreg pressure at m >= 512.
    # TODO(synk): on v5e/v6e, add pipeline_mode=pl.Buffered(3) on col1 if DMA is exposed.
    kernel = functools.partial(_fused_conv2_kernel, ho1=Ho1, wo1=Wo1, kh=KH, kw=KW,
                               m1=M1, cout=Cout)

    out = pl.pallas_call(
        kernel,
        out_shape=jax.ShapeDtypeStruct((N, M2, Cout), jnp.float32),
        grid_spec=pltpu.PrefetchScalarGridSpec(
            num_scalar_prefetch=0,
            grid=(N,),
            in_specs=[
                pl.BlockSpec((1, M1p, K1), lambda n: (n, 0, 0)),
                pl.BlockSpec((K1, C1p), lambda n: (0, 0)),               # resident
                pl.BlockSpec((1, C1p), lambda n: (0, 0)),                # resident
                pl.BlockSpec((1, C1p), lambda n: (0, 0)),                # resident
                pl.BlockSpec((KH * KW, C1p, C2p), lambda n: (0, 0, 0)),  # resident
                pl.BlockSpec((1, C2p), lambda n: (0, 0)),                # resident
                pl.BlockSpec((1, C2p), lambda n: (0, 0)),                # resident
            ],
            out_specs=pl.BlockSpec((1, M2, Cout), lambda n: (n, 0, 0)),
            scratch_shapes=[pltpu.VMEM((Ho1 + 2, Wo1 + 2, C1p), jnp.bfloat16)],
        ),
        compiler_params=pltpu.CompilerParams(
            dimension_semantics=("parallel",)),   # images independent -> both TCs on v7x
    )(col1, w1m, b1p, a1p, w2m, b2p, a2p)

    return jnp.transpose(out.reshape(N, Ho2, Wo2, Cout), (0, 3, 1, 2))   # NHWC -> NCHW


def init_conv2_params(key, in_planes, out_planes):
    # Deterministic synthetic init (shapes match nn.Conv2d / nn.PReLU of the module).
    k = jax.random.split(key, 4)
    return {
        "w1": jax.random.normal(k[0], (out_planes, in_planes, 3, 3), jnp.float32) * 0.1,
        "b1": jax.random.normal(k[1], (out_planes,), jnp.float32) * 0.1,
        "a1": jnp.full((out_planes,), 0.25, jnp.float32),   # PReLU default init
        "w2": jax.random.normal(k[2], (out_planes, out_planes, 3, 3), jnp.float32) * 0.1,
        "b2": jax.random.normal(k[3], (out_planes,), jnp.float32) * 0.1,
        "a2": jnp.full((out_planes,), 0.25, jnp.float32),
    }


def _conv_prelu_ref(x_nchw, w, b, a, stride, padding):
    # Reference with the same numerics as the kernel: bf16 MXU inputs, f32 accumulation.
    y = jax.lax.conv_general_dilated(
        x_nchw.astype(jnp.bfloat16), w.astype(jnp.bfloat16),
        (stride, stride), [(padding, padding)] * 2,
        dimension_numbers=("NCHW", "OIHW", "NCHW"),
        preferred_element_type=jnp.float32)
    y = y + b[None, :, None, None]
    return jnp.where(y >= 0, y, a[None, :, None, None] * y)


if __name__ == "__main__":
    key = jax.random.PRNGKey(0)
    kx, kp = jax.random.split(key)
    in_planes, out_planes = 4, 8
    x = jax.random.normal(kx, (2, in_planes, 16, 16), jnp.float32)   # NCHW like PyTorch
    params = init_conv2_params(kp, in_planes, out_planes)

    out = conv2_forward(x, params)
    out = jax.block_until_ready(out)
    assert out.shape == (2, out_planes, 8, 8), out.shape

    # Sanity check against XLA's conv with matching (bf16-in / f32-acc) numerics.
    ref = _conv_prelu_ref(x, params["w1"], params["b1"], params["a1"], 2, 1)
    ref = _conv_prelu_ref(ref, params["w2"], params["b2"], params["a2"], 1, 1)
    err = float(jnp.max(jnp.abs(out - ref)))
    assert jnp.allclose(out, ref, atol=2e-3, rtol=2e-3), err

    print("KERNEL_OK")
</pallas_src>

<mosaic_0001>
module attributes {stable_mosaic.version = 11 : i64} {
  func.func @_fused_conv2_kernel(%arg0: i32, %arg1: memref<1x64x36xbf16, #tpu.memory_space<vmem>>, %arg2: memref<36x128xbf16, #tpu.memory_space<vmem>>, %arg3: memref<1x128xf32, #tpu.memory_space<vmem>>, %arg4: memref<1x128xf32, #tpu.memory_space<vmem>>, %arg5: memref<9x128x128xbf16, #tpu.memory_space<vmem>>, %arg6: memref<1x128xf32, #tpu.memory_space<vmem>>, %arg7: memref<1x128xf32, #tpu.memory_space<vmem>>, %arg8: memref<1x64x8xf32, #tpu.memory_space<vmem>>, %arg9: memref<10x10x128xbf16, #tpu.memory_space<vmem>>) attributes {dimension_semantics = [#tpu.dimension_semantics<parallel>], iteration_bounds = array<i64: 2>, scalar_prefetch = 0 : i64, scratch_operands = 1 : i64, tpu.core_type = #tpu.core_type<tc>, window_params = [{transform_indices = @transform_0, window_bounds = array<i64: 1, 64, 36>}, {pipeline_mode = #tpu.pipeline_mode<synchronous>, transform_indices = @transform_1, window_bounds = array<i64: 36, 128>}, {pipeline_mode = #tpu.pipeline_mode<synchronous>, transform_indices = @transform_2, window_bounds = array<i64: 1, 128>}, {pipeline_mode = #tpu.pipeline_mode<synchronous>, transform_indices = @transform_3, window_bounds = array<i64: 1, 128>}, {pipeline_mode = #tpu.pipeline_mode<synchronous>, transform_indices = @transform_4, window_bounds = array<i64: 9, 128, 128>}, {pipeline_mode = #tpu.pipeline_mode<synchronous>, transform_indices = @transform_5, window_bounds = array<i64: 1, 128>}, {pipeline_mode = #tpu.pipeline_mode<synchronous>, transform_indices = @transform_6, window_bounds = array<i64: 1, 128>}, {transform_indices = @transform_7, window_bounds = array<i64: 1, 64, 8>}]} {
    %c0 = arith.constant 0 : index
    %c0_0 = arith.constant 0 : index
    %c0_1 = arith.constant 0 : index
    %0 = vector.load %arg1[%c0, %c0_0, %c0_1] : memref<1x64x36xbf16, #tpu.memory_space<vmem>>, vector<1x64x36xbf16>
    %1 = vector.shape_cast %0 : vector<1x64x36xbf16> to vector<64x36xbf16>
    %c0_2 = arith.constant 0 : index
    %c0_3 = arith.constant 0 : index
    %2 = vector.load %arg2[%c0_2, %c0_3] : memref<36x128xbf16, #tpu.memory_space<vmem>>, vector<36x128xbf16>
    %cst = arith.constant dense<0.000000e+00> : vector<64x128xf32>
    %3 = tpu.matmul %1, %2, %cst {dimension_numbers = #tpu.dot_dimension_numbers<[1], [0], [0], [1], [0, 0, 1, 1], [], []>} : vector<64x36xbf16>, vector<36x128xbf16>, vector<64x128xf32> -> vector<64x128xf32>
    %c0_4 = arith.constant 0 : index
    %c0_5 = arith.constant 0 : index
    %4 = vector.load %arg3[%c0_4, %c0_5] : memref<1x128xf32, #tpu.memory_space<vmem>>, vector<1x128xf32>
    %5 = vector.broadcast %4 : vector<1x128xf32> to vector<64x128xf32>
    %6 = arith.addf %3, %5 : vector<64x128xf32>
    %cst_6 = arith.constant 0.000000e+00 : f32
    %7 = vector.broadcast %cst_6 : f32 to vector<64x128xf32>
    %8 = arith.cmpf oge, %6, %7 : vector<64x128xf32>
    %c0_7 = arith.constant 0 : index
    %c0_8 = arith.constant 0 : index
    %9 = vector.load %arg4[%c0_7, %c0_8] : memref<1x128xf32, #tpu.memory_space<vmem>>, vector<1x128xf32>
    %10 = vector.broadcast %9 : vector<1x128xf32> to vector<64x128xf32>
    %11 = arith.mulf %10, %6 : vector<64x128xf32>
    %12 = arith.select %8, %6, %11 : vector<64x128xi1>, vector<64x128xf32>
    %cst_9 = arith.constant 0.000000e+00 : bf16
    %13 = vector.broadcast %cst_9 : bf16 to vector<10x10x128xbf16>
    %c0_10 = arith.constant 0 : index
    %c0_11 = arith.constant 0 : index
    %c0_12 = arith.constant 0 : index
    %14 = vector.load %arg9[%c0_10, %c0_11, %c0_12] : memref<10x10x128xbf16, #tpu.memory_space<vmem>>, vector<10x10x128xbf16>
    tpu.vector_store %arg9[%c0_10, %c0_11, %c0_12], %13 {strides = array<i32>} : memref<10x10x128xbf16, #tpu.memory_space<vmem>>, vector<10x10x128xbf16>,
    %15 = vector.shape_cast %12 : vector<64x128xf32> to vector<8x8x128xf32>
    %16 = arith.truncf %15 : vector<8x8x128xf32> to vector<8x8x128xbf16>
    %c1 = arith.constant 1 : index
    %c1_13 = arith.constant 1 : index
    %c0_14 = arith.constant 0 : index
    %17 = vector.load %arg9[%c1, %c1_13, %c0_14] : memref<10x10x128xbf16, #tpu.memory_space<vmem>>, vector<8x8x128xbf16>
    tpu.vector_store %arg9[%c1, %c1_13, %c0_14], %16 {strides = array<i32>} : memref<10x10x128xbf16, #tpu.memory_space<vmem>>, vector<8x8x128xbf16>,
    %cst_15 = arith.constant 0.000000e+00 : f32
    %18 = vector.broadcast %cst_15 : f32 to vector<64x128xf32>
    %c0_16 = arith.constant 0 : index
    %c0_17 = arith.constant 0 : index
    %c0_18 = arith.constant 0 : index
    %19 = vector.load %arg9[%c0_16, %c0_17, %c0_18] : memref<10x10x128xbf16, #tpu.memory_space<vmem>>, vector<8x8x128xbf16>
    %20 = vector.shape_cast %19 : vector<8x8x128xbf16> to vector<64x128xbf16>
    %c0_19 = arith.constant 0 : index
    %c0_20 = arith.constant 0 : index
    %c0_21 = arith.constant 0 : index
    %21 = vector.load %arg5[%c0_19, %c0_20, %c0_21] : memref<9x128x128xbf16, #tpu.memory_space<vmem>>, vector<1x128x128xbf16>
    %22 = vector.shape_cast %21 : vector<1x128x128xbf16> to vector<128x128xbf16>
    %cst_22 = arith.constant dense<0.000000e+00> : vector<64x128xf32>
    %23 = tpu.matmul %20, %22, %cst_22 {dimension_numbers = #tpu.dot_dimension_numbers<[1], [0], [0], [1], [0, 0, 1, 1], [], []>} : vector<64x128xbf16>, vector<128x128xbf16>, vector<64x128xf32> -> vector<64x128xf32>
    %24 = arith.addf %18, %23 : vector<64x128xf32>
    %c0_23 = arith.constant 0 : index
    %c1_24 = arith.constant 1 : index
    %c0_25 = arith.constant 0 : index
    %25 = vector.load %arg9[%c0_23, %c1_24, %c0_25] : memref<10x10x128xbf16, #tpu.memory_space<vmem>>, vector<8x8x128xbf16>
    %26 = vector.shape_cast %25 : vector<8x8x128xbf16> to vector<64x128xbf16>
    %c1_26 = arith.constant 1 : index
    %c0_27 = arith.constant 0 : index
    %c0_28 = arith.constant 0 : index
    %27 = vector.load %arg5[%c1_26, %c0_27, %c0_28] : memref<9x128x128xbf16, #tpu.memory_space<vmem>>, vector<1x128x128xbf16>
    %28 = vector.shape_cast %27 : vector<1x128x128xbf16> to vector<128x128xbf16>
    %cst_29 = arith.constant dense<0.000000e+00> : vector<64x128xf32>
    %29 = tpu.matmul %26, %28, %cst_29 {dimension_numbers = #tpu.dot_dimension_numbers<[1], [0], [0], [1], [0, 0, 1, 1], [], []>} : vector<64x128xbf16>, vector<128x128xbf16>, vector<64x128xf32> -> vector<64x128xf32>
    %30 = arith.addf %24, %29 : vector<64x128xf32>
    %c0_30 = arith.constant 0 : index
    %c2 = arith.constant 2 : index
    %c0_31 = arith.constant 0 : index
    %31 = vector.load %arg9[%c0_30, %c2, %c0_31] : memref<10x10x128xbf16, #tpu.memory_space<vmem>>, vector<8x8x128xbf16>
    %32 = vector.shape_cast %31 : vector<8x8x128xbf16> to vector<64x128xbf16>
    %c2_32 = arith.constant 2 : index
    %c0_33 = arith.constant 0 : index
    %c0_34 = arith.constant 0 : index
    %33 = vector.load %arg5[%c2_32, %c0_33, %c0_34] : memref<9x128x128xbf16, #tpu.memory_space<vmem>>, vector<1x128x128xbf16>
    %34 = vector.shape_cast %33 : vector<1x128x128xbf16> to vector<128x128xbf16>
    %cst_35 = arith.constant dense<0.000000e+00> : vector<64x128xf32>
    %35 = tpu.matmul %32, %34, %cst_35 {dimension_numbers = #tpu.dot_dimension_numbers<[1], [0], [0], [1], [0, 0, 1, 1], [], []>} : vector<64x128xbf16>, vector<128x128xbf16>, vector<64x128xf32> -> vector<64x128xf32>
    %36 = arith.addf %30, %35 : vector<64x128xf32>
    %c1_36 = arith.constant 1 : index
    %c0_37 = arith.constant 0 : index
    %c0_38 = arith.constant 0 : index
    %37 = vector.load %arg9[%c1_36, %c0_37, %c0_38] : memref<10x10x128xbf16, #tpu.memory_space<vmem>>, vector<8x8x128xbf16>
    %38 = vector.shape_cast %37 : vector<8x8x128xbf16> to vector<64x128xbf16>
    %c3 = arith.constant 3 : index
    %c0_39 = arith.constant 0 : index
    %c0_40 = arith.constant 0 : index
    %39 = vector.load %arg5[%c3, %c0_39, %c0_40] : memref<9x128x128xbf16, #tpu.memory_space<vmem>>, vector<1x128x128xbf16>
    %40 = vector.shape_cast %39 : vector<1x128x128xbf16> to vector<128x128xbf16>
    %cst_41 = arith.constant dense<0.000000e+00> : vector<64x128xf32>
    %41 = tpu.matmul %38, %40, %cst_41 {dimension_numbers = #tpu.dot_dimension_numbers<[1], [0], [0], [1], [0, 0, 1, 1], [], []>} : vector<64x128xbf16>, vector<128x128xbf16>, vector<64x128xf32> -> vector<64x128xf32>
    %42 = arith.addf %36, %41 : vector<64x128xf32>
    %c1_42 = arith.constant 1 : index
    %c1_43 = arith.constant 1 : index
    %c0_44 = arith.constant 0 : index
    %43 = vector.load %arg9[%c1_42, %c1_43, %c0_44] : memref<10x10x128xbf16, #tpu.memory_space<vmem>>, vector<8x8x128xbf16>
    %44 = vector.shape_cast %43 : vector<8x8x128xbf16> to vector<64x128xbf16>
    %c4 = arith.constant 4 : index
    %c0_45 = arith.constant 0 : index
    %c0_46 = arith.constant 0 : index
    %45 = vector.load %arg5[%c4, %c0_45, %c0_46] : memref<9x128x128xbf16, #tpu.memory_space<vmem>>, vector<1x128x128xbf16>
    %46 = vector.shape_cast %45 : vector<1x128x128xbf16> to vector<128x128xbf16>
    %cst_47 = arith.constant dense<0.000000e+00> : vector<64x128xf32>
    %47 = tpu.matmul %44, %46, %cst_47 {dimension_numbers = #tpu.dot_dimension_numbers<[1], [0], [0], [1], [0, 0, 1, 1], [], []>} : vector<64x128xbf16>, vector<128x128xbf16>, vector<64x128xf32> -> vector<64x128xf32>
    %48 = arith.addf %42, %47 : vector<64x128xf32>
    %c1_48 = arith.constant 1 : index
    %c2_49 = arith.constant 2 : index
    %c0_50 = arith.constant 0 : index
    %49 = vector.load %arg9[%c1_48, %c2_49, %c0_50] : memref<10x10x128xbf16, #tpu.memory_space<vmem>>, vector<8x8x128xbf16>
    %50 = vector.shape_cast %49 : vector<8x8x128xbf16> to vector<64x128xbf16>
    %c5 = arith.constant 5 : index
    %c0_51 = arith.constant 0 : index
    %c0_52 = arith.constant 0 : index
    %51 = vector.load %arg5[%c5, %c0_51, %c0_52] : memref<9x128x128xbf16, #tpu.memory_space<vmem>>, vector<1x128x128xbf16>
    %52 = vector.shape_cast %51 : vector<1x128x128xbf16> to vector<128x128xbf16>
    %cst_53 = arith.constant dense<0.000000e+00> : vector<64x128xf32>
    %53 = tpu.matmul %50, %52, %cst_53 {dimension_numbers = #tpu.dot_dimension_numbers<[1], [0], [0], [1], [0, 0, 1, 1], [], []>} : vector<64x128xbf16>, vector<128x128xbf16>, vector<64x128xf32> -> vector<64x128xf32>
    %54 = arith.addf %48, %53 : vector<64x128xf32>
    %c2_54 = arith.constant 2 : index
    %c0_55 = arith.constant 0 : index
    %c0_56 = arith.constant 0 : index
    %55 = vector.load %arg9[%c2_54, %c0_55, %c0_56] : memref<10x10x128xbf16, #tpu.memory_space<vmem>>, vector<8x8x128xbf16>
    %56 = vector.shape_cast %55 : vector<8x8x128xbf16> to vector<64x128xbf16>
    %c6 = arith.constant 6 : index
    %c0_57 = arith.constant 0 : index
    %c0_58 = arith.constant 0 : index
    %57 = vector.load %arg5[%c6, %c0_57, %c0_58] : memref<9x128x128xbf16, #tpu.memory_space<vmem>>, vector<1x128x128xbf16>
    %58 = vector.shape_cast %57 : vector<1x128x128xbf16> to vector<128x128xbf16>
    %cst_59 = arith.constant dense<0.000000e+00> : vector<64x128xf32>
    %59 = tpu.matmul %56, %58, %cst_59 {dimension_numbers = #tpu.dot_dimension_numbers<[1], [0], [0], [1], [0, 0, 1, 1], [], []>} : vector<64x128xbf16>, vector<128x128xbf16>, vector<64x128xf32> -> vector<64x128xf32>
    %60 = arith.addf %54, %59 : vector<64x128xf32>
    %c2_60 = arith.constant 2 : index
    %c1_61 = arith.constant 1 : index
    %c0_62 = arith.constant 0 : index
    %61 = vector.load %arg9[%c2_60, %c1_61, %c0_62] : memref<10x10x128xbf16, #tpu.memory_space<vmem>>, vector<8x8x128xbf16>
    %62 = vector.shape_cast %61 : vector<8x8x128xbf16> to vector<64x128xbf16>
    %c7 = arith.constant 7 : index
    %c0_63 = arith.constant 0 : index
    %c0_64 = arith.constant 0 : index
    %63 = vector.load %arg5[%c7, %c0_63, %c0_64] : memref<9x128x128xbf16, #tpu.memory_space<vmem>>, vector<1x128x128xbf16>
    %64 = vector.shape_cast %63 : vector<1x128x128xbf16> to vector<128x128xbf16>
    %cst_65 = arith.constant dense<0.000000e+00> : vector<64x128xf32>
    %65 = tpu.matmul %62, %64, %cst_65 {dimension_numbers = #tpu.dot_dimension_numbers<[1], [0], [0], [1], [0, 0, 1, 1], [], []>} : vector<64x128xbf16>, vector<128x128xbf16>, vector<64x128xf32> -> vector<64x128xf32>
    %66 = arith.addf %60, %65 : vector<64x128xf32>
    %c2_66 = arith.constant 2 : index
    %c2_67 = arith.constant 2 : index
    %c0_68 = arith.constant 0 : index
    %67 = vector.load %arg9[%c2_66, %c2_67, %c0_68] : memref<10x10x128xbf16, #tpu.memory_space<vmem>>, vector<8x8x128xbf16>
    %68 = vector.shape_cast %67 : vector<8x8x128xbf16> to vector<64x128xbf16>
    %c8 = arith.constant 8 : index
    %c0_69 = arith.constant 0 : index
    %c0_70 = arith.constant 0 : index
    %69 = vector.load %arg5[%c8, %c0_69, %c0_70] : memref<9x128x128xbf16, #tpu.memory_space<vmem>>, vector<1x128x128xbf16>
    %70 = vector.shape_cast %69 : vector<1x128x128xbf16> to vector<128x128xbf16>
    %cst_71 = arith.constant dense<0.000000e+00> : vector<64x128xf32>
    %71 = tpu.matmul %68, %70, %cst_71 {dimension_numbers = #tpu.dot_dimension_numbers<[1], [0], [0], [1], [0, 0, 1, 1], [], []>} : vector<64x128xbf16>, vector<128x128xbf16>, vector<64x128xf32> -> vector<64x128xf32>
    %72 = arith.addf %66, %71 : vector<64x128xf32>
    %c0_72 = arith.constant 0 : index
    %c0_73 = arith.constant 0 : index
    %73 = vector.load %arg6[%c0_72, %c0_73] : memref<1x128xf32, #tpu.memory_space<vmem>>, vector<1x128xf32>
    %74 = vector.broadcast %73 : vector<1x128xf32> to vector<64x128xf32>
    %75 = arith.addf %72, %74 : vector<64x128xf32>
    %cst_74 = arith.constant 0.000000e+00 : f32
    %76 = vector.broadcast %cst_74 : f32 to vector<64x128xf32>
    %77 = arith.cmpf oge, %75, %76 : vector<64x128xf32>
    %c0_75 = arith.constant 0 : index
    %c0_76 = arith.constant 0 : index
    %78 = vector.load %arg7[%c0_75, %c0_76] : memref<1x128xf32, #tpu.memory_space<vmem>>, vector<1x128xf32>
    %79 = vector.broadcast %78 : vector<1x128xf32> to vector<64x128xf32>
    %80 = arith.mulf %79, %75 : vector<64x128xf32>
    %81 = arith.select %77, %75, %80 : vector<64x128xi1>, vector<64x128xf32>
    %82 = vector.extract_strided_slice %81 {offsets = [0, 0], sizes = [64, 8], strides = [1, 1]} : vector<64x128xf32> to vector<64x8xf32>
    %c0_77 = arith.constant 0 : index
    %c0_78 = arith.constant 0 : index
    %c0_79 = arith.constant 0 : index
    %83 = vector.load %arg8[%c0_77, %c0_78, %c0_79] : memref<1x64x8xf32, #tpu.memory_space<vmem>>, vector<1x64x8xf32>
    %84 = vector.shape_cast %83 : vector<1x64x8xf32> to vector<64x8xf32>
    %85 = vector.shape_cast %82 : vector<64x8xf32> to vector<1x64x8xf32>
    tpu.vector_store %arg8[%c0_77, %c0_78, %c0_79], %85 {strides = array<i32>} : memref<1x64x8xf32, #tpu.memory_space<vmem>>, vector<1x64x8xf32>,
    return
  }
  func.func @transform_0(%arg0: i32) -> (i32, i32, i32) {
    %c0_i32 = arith.constant 0 : i32
    %c0_i32_0 = arith.constant 0 : i32
    %c0_i32_1 = arith.constant 0 : i32
    return %arg0, %c0_i32, %c0_i32_0 : i32, i32, i32
  }
  func.func @transform_1(%arg0: i32) -> (i32, i32) {
    %c0_i32 = arith.constant 0 : i32
    %c0_i32_0 = arith.constant 0 : i32
    %c0_i32_1 = arith.constant 0 : i32
    return %c0_i32, %c0_i32_0 : i32, i32
  }
  func.func @transform_2(%arg0: i32) -> (i32, i32) {
    %c0_i32 = arith.constant 0 : i32
    %c0_i32_0 = arith.constant 0 : i32
    %c0_i32_1 = arith.constant 0 : i32
    return %c0_i32, %c0_i32_0 : i32, i32
  }
  func.func @transform_3(%arg0: i32) -> (i32, i32) {
    %c0_i32 = arith.constant 0 : i32
    %c0_i32_0 = arith.constant 0 : i32
    %c0_i32_1 = arith.constant 0 : i32
    return %c0_i32, %c0_i32_0 : i32, i32
  }
  func.func @transform_4(%arg0: i32) -> (i32, i32, i32) {
    %c0_i32 = arith.constant 0 : i32
    %c0_i32_0 = arith.constant 0 : i32
    %c0_i32_1 = arith.constant 0 : i32
    %c0_i32_2 = arith.constant 0 : i32
    return %c0_i32, %c0_i32_0, %c0_i32_1 : i32, i32, i32
  }
  func.func @transform_5(%arg0: i32) -> (i32, i32) {
    %c0_i32 = arith.constant 0 : i32
    %c0_i32_0 = arith.constant 0 : i32
    %c0_i32_1 = arith.constant 0 : i32
    return %c0_i32, %c0_i32_0 : i32, i32
  }
  func.func @transform_6(%arg0: i32) -> (i32, i32) {
    %c0_i32 = arith.constant 0 : i32
    %c0_i32_0 = arith.constant 0 : i32
    %c0_i32_1 = arith.constant 0 : i32
    return %c0_i32, %c0_i32_0 : i32, i32
  }
  func.func @transform_7(%arg0: i32) -> (i32, i32, i32) {
    %c0_i32 = arith.constant 0 : i32
    %c0_i32_0 = arith.constant 0 : i32
    %c0_i32_1 = arith.constant 0 : i32
    return %arg0, %c0_i32, %c0_i32_0 : i32, i32, i32
  }
}

</mosaic_0001>

<llo_original>
// kernel: tpu_custom_call.1
$region0: #{tpu_custom_call.1}
  #allocation0 [shape = 'u32[]', space=smem, size = 0x4, offset = 0x4, fixed_abs, tag = 'smem constant byte address 0x4 - core index']
  #allocation1 [shape = 'u32[72,128]{1,0:T(1,128)}', space=vmem, size = 0x9000, scoped, tag = 'internal scratch']
  #allocation2 [shape = 'bf16[10,10,128]{2,1,0:T(8,128)(2,1)}', space=vmem, size = 0xa000, scoped, tag = 'scratch operand']
  %s0 = inlined_call_operand.vmem [shape: bf16[2,64,36], index: 0, kind: input, shape index: {}]
  %s1 = inlined_call_operand.vmem [shape: bf16[36,128], index: 1, kind: input, shape index: {}]
  %s2 = inlined_call_operand.vmem [shape: f32[1,128], index: 2, kind: input, shape index: {}]
  %s3 = inlined_call_operand.vmem [shape: f32[1,128], index: 3, kind: input, shape index: {}]
  %s4 = inlined_call_operand.hbm [shape: bf16[9,128,128], index: 4, kind: input, shape index: {}]
  %s5 = inlined_call_operand.vmem [shape: f32[1,128], index: 5, kind: input, shape index: {}]
  %s6 = inlined_call_operand.vmem [shape: f32[1,128], index: 6, kind: input, shape index: {}]
  %s7 = inlined_call_operand.vmem [shape: f32[2,64,8], index: 7, kind: output, shape index: {}]
  %s8 = sld [smem:[#allocation0]]
  $region65: #{tpu_custom_call.1} parent=0
    _
  %s10 = ssub.s32 1, %s8
  %s11 = scalar_select 0, %s10, %s8
  $region1: #{tpu_custom_call.1} parent=0
    #allocation3 [shape = 'u8[294912]{0}', space=vmem, size = 0x48000, scoped, tag = 'input window, operand 4, single buffered']
    #allocation4 [shape = 's32[2]{0}', space=sflag, size = 0x8, scoped, tag = 'scoped memory for tpu_custom_call.1']
    %12 = vsyncpa [#allocation4], 0
    loop: start=0, step=1, limit=4
    $region2: #{tpu_custom_call.1} parent=1 // loop_pre_header
      _
    $region3: #{tpu_custom_call.1} parent=1 // loop_header
      %s14 = sphi 0, %s18
      %p15 = scmp.ge.s32.totalorder %s14, 4
      %s24 = sphi 0, %s26
      %s27 = sphi 0, %s24
      %s28 = sphi 0, %s27
      %s44 = sphi 0, %s28
      %s48 = sphi 0, %s48
      %s50 = sphi 0, %s48
      %s51 = sphi 0, %s50
      %s65 = sphi 0, %s51
      %s69 = sphi 0, %s69
      %s71 = sphi 0, %s69
      %s72 = sphi 0, %s71
      %s86 = sphi 0, %s72
      %s90 = sphi 0, %s90
      %s92 = sphi 0, %s90
      %s93 = sphi 0, %s92
      %s107 = sphi 0, %s93
      %s111 = sphi 0, %s111
      %s113 = sphi 0, %s111
      %s114 = sphi 0, %s113
      %s128 = sphi 0, %s114
      %s132 = sphi 0, %s132
      %s134 = sphi 0, %s132
      %s135 = sphi 0, %s134
      %s149 = sphi 0, %s135
      %s153 = sphi 0, %s153
      %s155 = sphi 0, %s153
      %s156 = sphi 0, %s155
      %s170 = sphi 0, %s156
      %s176 = sphi 0, %s178
      %s179 = sphi 0, %s176
      %s180 = sphi 0, %s179
      %s196 = sphi 0, %s180
    $region4: #{tpu_custom_call.1} parent=1 // loop_header_branch
      %17 = sbr.rel (%p15) target = $region8
    $region5: #{tpu_custom_call.1} parent=1 // loop_body
      %s19 = ssub.s32 %s14, 1
      %s20 = ssub.s32 %s14, 2
      %s21 = sadd.s32 %s14, 1
      %s22 = ssub.s32 %s14, %s21
      %p23 = scmp.eq.s32.totalorder %s22, 0
      %s25 = sadd.s32 %s24, 1
      %s26 = scalar_select %p23, %s24, %s25
      %p29 = pneg %p23
      %p30 = scmp.eq.s32.totalorder %s14, 1
      %p31 = por %p29, %p30
      %p32 = scmp.ne.s32.totalorder %s24, %s27
      %p33 = scmp.eq.s32.totalorder %s14, 0
      %p34 = por %p32, %p33
      %p35 = scmp.ne.s32.totalorder %s24, %s27
      %p36 = scmp.eq.s32.totalorder %s19, 1
      %p37 = por %p35, %p36
      %p38 = scmp.ne.s32.totalorder %s27, %s28
      %p39 = scmp.eq.s32.totalorder %s19, 0
      %p40 = por %p38, %p39
      %p41 = scmp.ne.s32.totalorder %s27, %s28
      %p42 = scmp.eq.s32.totalorder %s20, 1
      %p43 = por %p41, %p42
      %p45 = scmp.ne.s32.totalorder %s28, %s44
      %p46 = scmp.eq.s32.totalorder %s20, 0
      %p47 = por %p45, %p46
      %s49 = sadd.s32 %s48, 1
      %p52 = scmp.eq.s32.totalorder %s14, 1
      %p53 = scmp.ne.s32.totalorder %s48, %s50
      %p54 = scmp.eq.s32.totalorder %s14, 0
      %p55 = por %p53, %p54
      %p56 = scmp.ne.s32.totalorder %s48, %s50
      %p57 = scmp.eq.s32.totalorder %s19, 1
      %p58 = por %p56, %p57
      %p59 = scmp.ne.s32.totalorder %s50, %s51
      %p60 = scmp.eq.s32.totalorder %s19, 0
      %p61 = por %p59, %p60
      %p62 = scmp.ne.s32.totalorder %s50, %s51
      %p63 = scmp.eq.s32.totalorder %s20, 1
      %p64 = por %p62, %p63
      %p66 = scmp.ne.s32.totalorder %s51, %s65
      %p67 = scmp.eq.s32.totalorder %s20, 0
      %p68 = por %p66, %p67
      %s70 = sadd.s32 %s69, 1
      %p73 = scmp.eq.s32.totalorder %s14, 1
      %p74 = scmp.ne.s32.totalorder %s69, %s71
      %p75 = scmp.eq.s32.totalorder %s14, 0
      %p76 = por %p74, %p75
      %p77 = scmp.ne.s32.totalorder %s69, %s71
      %p78 = scmp.eq.s32.totalorder %s19, 1
      %p79 = por %p77, %p78
      %p80 = scmp.ne.s32.totalorder %s71, %s72
      %p81 = scmp.eq.s32.totalorder %s19, 0
      %p82 = por %p80, %p81
      %p83 = scmp.ne.s32.totalorder %s71, %s72
      %p84 = scmp.eq.s32.totalorder %s20, 1
      %p85 = por %p83, %p84
      %p87 = scmp.ne.s32.totalorder %s72, %s86
      %p88 = scmp.eq.s32.totalorder %s20, 0
      %p89 = por %p87, %p88
      %s91 = sadd.s32 %s90, 1
      %p94 = scmp.eq.s32.totalorder %s14, 1
      %p95 = scmp.ne.s32.totalorder %s90, %s92
      %p96 = scmp.eq.s32.totalorder %s14, 0
      %p97 = por %p95, %p96
      %p98 = scmp.ne.s32.totalorder %s90, %s92
      %p99 = scmp.eq.s32.totalorder %s19, 1
      %p100 = por %p98, %p99
      %p101 = scmp.ne.s32.totalorder %s92, %s93
      %p102 = scmp.eq.s32.totalorder %s19, 0
      %p103 = por %p101, %p102
      %p104 = scmp.ne.s32.totalorder %s92, %s93
      %p105 = scmp.eq.s32.totalorder %s20, 1
      %p106 = por %p104, %p105
      %p108 = scmp.ne.s32.totalorder %s93, %s107
      %p109 = scmp.eq.s32.totalorder %s20, 0
      %p110 = por %p108, %p109
      %s112 = sadd.s32 %s111, 1
      %p115 = scmp.eq.s32.totalorder %s14, 1
      %p116 = scmp.ne.s32.totalorder %s111, %s113
      %p117 = scmp.eq.s32.totalorder %s14, 0
      %p118 = por %p116, %p117
      %p119 = scmp.ne.s32.totalorder %s111, %s113
      %p120 = scmp.eq.s32.totalorder %s19, 1
      %p121 = por %p119, %p120
      %p122 = scmp.ne.s32.totalorder %s113, %s114
      %p123 = scmp.eq.s32.totalorder %s19, 0
      %p124 = por %p122, %p123
      %p125 = scmp.ne.s32.totalorder %s113, %s114
      %p126 = scmp.eq.s32.totalorder %s20, 1
      %p127 = por %p125, %p126
      %p129 = scmp.ne.s32.totalorder %s114, %s128
      %p130 = scmp.eq.s32.totalorder %s20, 0
      %p131 = por %p129, %p130
      %s133 = sadd.s32 %s132, 1
      %p136 = scmp.eq.s32.totalorder %s14, 1
      %p137 = scmp.ne.s32.totalorder %s132, %s134
      %p138 = scmp.eq.s32.totalorder %s14, 0
      %p139 = por %p137, %p138
      %p140 = scmp.ne.s32.totalorder %s132, %s134
      %p141 = scmp.eq.s32.totalorder %s19, 1
      %p142 = por %p140, %p141
      %p143 = scmp.ne.s32.totalorder %s134, %s135
      %p144 = scmp.eq.s32.totalorder %s19, 0
      %p145 = por %p143, %p144
      %p146 = scmp.ne.s32.totalorder %s134, %s135
      %p147 = scmp.eq.s32.totalorder %s20, 1
      %p148 = por %p146, %p147
      %p150 = scmp.ne.s32.totalorder %s135, %s149
      %p151 = scmp.eq.s32.totalorder %s20, 0
      %p152 = por %p150, %p151
      %s154 = sadd.s32 %s153, 1
      %p157 = scmp.eq.s32.totalorder %s14, 1
      %p158 = scmp.ne.s32.totalorder %s153, %s155
      %p159 = scmp.eq.s32.totalorder %s14, 0
      %p160 = por %p158, %p159
      %p161 = scmp.ne.s32.totalorder %s153, %s155
      %p162 = scmp.eq.s32.totalorder %s19, 1
      %p163 = por %p161, %p162
      %p164 = scmp.ne.s32.totalorder %s155, %s156
      %p165 = scmp.eq.s32.totalorder %s19, 0
      %p166 = por %p164, %p165
      %p167 = scmp.ne.s32.totalorder %s155, %s156
      %p168 = scmp.eq.s32.totalorder %s20, 1
      %p169 = por %p167, %p168
      %p171 = scmp.ne.s32.totalorder %s156, %s170
      %p172 = scmp.eq.s32.totalorder %s20, 0
      %p173 = por %p171, %p172
      %s174 = ssub.s32 %s14, %s21
      %p175 = scmp.eq.s32.totalorder %s174, 0
      %s177 = sadd.s32 %s176, 1
      %s178 = scalar_select %p175, %s176, %s177
      %p181 = pneg %p175
      %p182 = scmp.eq.s32.totalorder %s14, 1
      %p183 = por %p181, %p182
      %p184 = scmp.ne.s32.totalorder %s176, %s179
      %p185 = scmp.eq.s32.totalorder %s14, 0
      %p186 = por %p184, %p185
      %p187 = scmp.ne.s32.totalorder %s176, %s179
      %p188 = scmp.eq.s32.totalorder %s19, 1
      %p189 = por %p187, %p188
      %p190 = scmp.ne.s32.totalorder %s179, %s180
      %p191 = scmp.eq.s32.totalorder %s19, 0
      %p192 = por %p190, %p191
      %p193 = scmp.ne.s32.totalorder %s179, %s180
      %p194 = scmp.eq.s32.totalorder %s20, 1
      %p195 = por %p193, %p194
      %p197 = scmp.ne.s32.totalorder %s180, %s196
      %p198 = scmp.eq.s32.totalorder %s20, 0
      %p199 = por %p197, %p198
      %p200 = scmp.le.s32.totalorder 1, %s14
      %p201 = scmp.lt.s32.totalorder %s14, 3
      %p202 = pnand %p200, %p201
      %p203 = pneg %p202
      // Predicated region
      $region9: #{tpu_custom_call.1} parent=5 // pred_check
        _
      $region10: #{tpu_custom_call.1} parent=5 // pred_check_branch
        %205 = sbr.rel (%p202) target = $region12
      $region11: #{tpu_custom_call.1} parent=5 // pred_region
        %s206 = ssub.s32 %s14, 1
        // Predicated region
        $region13: #{tpu_custom_call.1} parent=11 // pred_check
          %p207 = pneg %p61
        $region14: #{tpu_custom_call.1} parent=11 // pred_check_branch
          %209 = sbr.rel (%p207) target = $region16
        $region15: #{tpu_custom_call.1} parent=11 // pred_region
          _
        $region16: #{tpu_custom_call.1} parent=11 // pred_fallthru
          _
        // Predicated region
        $region17: #{tpu_custom_call.1} parent=11 // pred_check
          %p210 = pneg %p82
        $region18: #{tpu_custom_call.1} parent=11 // pred_check_branch
          %212 = sbr.rel (%p210) target = $region20
        $region19: #{tpu_custom_call.1} parent=11 // pred_region
          _
        $region20: #{tpu_custom_call.1} parent=11 // pred_fallthru
          _
        // Predicated region
        $region21: #{tpu_custom_call.1} parent=11 // pred_check
          %p213 = pneg %p103
        $region22: #{tpu_custom_call.1} parent=11 // pred_check_branch
          %215 = sbr.rel (%p213) target = $region24
        $region23: #{tpu_custom_call.1} parent=11 // pred_region
          _
        $region24: #{tpu_custom_call.1} parent=11 // pred_fallthru
          _
        // Predicated region
        $region25: #{tpu_custom_call.1} parent=11 // pred_check
          %p216 = pneg %p124
        $region26: #{tpu_custom_call.1} parent=11 // pred_check_branch
          %218 = sbr.rel (%p216) target = $region28
        $region27: #{tpu_custom_call.1} parent=11 // pred_region
          %220 = vsyncadd [#allocation4], 0
          %s221 = sshll.u32 %s4, 4
          %s222 = int_to_ptr.hbm [resolvable:$true] %s221
          %s223 = sshll.u32 [#allocation3], 4
          %s224 = int_to_ptr.vmem [resolvable:$true] %s223
          %229 = dma.hbm_to_vmem [thread:$0]  %s222, 9216, %s224, [#allocation4], 64, 64, 4
        $region28: #{tpu_custom_call.1} parent=11 // pred_fallthru
          _
        // Predicated region
        $region29: #{tpu_custom_call.1} parent=11 // pred_check
          %p230 = pneg %p145
        $region30: #{tpu_custom_call.1} parent=11 // pred_check_branch
          %232 = sbr.rel (%p230) target = $region32
        $region31: #{tpu_custom_call.1} parent=11 // pred_region
          _
        $region32: #{tpu_custom_call.1} parent=11 // pred_fallthru
          _
        // Predicated region
        $region33: #{tpu_custom_call.1} parent=11 // pred_check
          %p233 = pneg %p166
        $region34: #{tpu_custom_call.1} parent=11 // pred_check_branch
          %235 = sbr.rel (%p233) target = $region36
        $region35: #{tpu_custom_call.1} parent=11 // pred_region
          _
        $region36: #{tpu_custom_call.1} parent=11 // pred_fallthru
          _
      $region12: #{tpu_custom_call.1} parent=5 // pred_fallthru
        _
      %p236 = scmp.lt.s32.totalorder %s14, 2
      // Predicated region
      $region37: #{tpu_custom_call.1} parent=5 // pred_check
        %p237 = pneg %p236
      $region38: #{tpu_custom_call.1} parent=5 // pred_check_branch
        %239 = sbr.rel (%p237) target = $region40
      $region39: #{tpu_custom_call.1} parent=5 // pred_region
        // Predicated region
        $region41: #{tpu_custom_call.1} parent=39 // pred_check
          %p240 = pneg %p34
        $region42: #{tpu_custom_call.1} parent=39 // pred_check_branch
          %242 = sbr.rel (%p240) target = $region44
        $region43: #{tpu_custom_call.1} parent=39 // pred_region
          %p243 = scmp.lt.s32.totalorder %s14, 1
          %s244 = scalar_select %p243, %s14, 1
          %s245 = smul.addr %s244, 8
          %s246 = smul.addr %s245, 4
          %s247 = scalar_lea.vmem %s0, %s246
        $region44: #{tpu_custom_call.1} parent=39 // pred_fallthru
          _
      $region40: #{tpu_custom_call.1} parent=5 // pred_fallthru
        _
      %p248 = scmp.le.s32.totalorder 1, %s14
      %p249 = scmp.lt.s32.totalorder %s14, 3
      %p250 = pnand %p248, %p249
      %p251 = pneg %p250
      // Predicated region
      $region45: #{tpu_custom_call.1} parent=5 // pred_check
        _
      $region46: #{tpu_custom_call.1} parent=5 // pred_check_branch
        %253 = sbr.rel (%p250) target = $region48
      $region47: #{tpu_custom_call.1} parent=5 // pred_region
        %s254 = ssub.s32 %s14, 1
        // Predicated region
        $region49: #{tpu_custom_call.1} parent=47 // pred_check
          %p255 = pneg %p124
        $region50: #{tpu_custom_call.1} parent=47 // pred_check_branch
          %257 = sbr.rel (%p255) target = $region52
        $region51: #{tpu_custom_call.1} parent=47 // pred_region
          %259 = dma.done [#allocation4], 9216
        $region52: #{tpu_custom_call.1} parent=47 // pred_fallthru
          _
        %p260 = scmp.lt.s32.totalorder %s19, 1
        %s261 = scalar_select %p260, %s19, 1
        %s262 = smul.addr %s261, 8
        %s263 = smul.addr %s262, 4
        %s264 = scalar_lea.vmem %s0, %s263
        %p265 = pneg %p40
        %p266 = pneg %p37
        %p267 = pneg %p61
        %p268 = pneg %p58
        %p269 = pneg %p82
        %p270 = pneg %p79
        %p271 = pneg %p103
        %p272 = pneg %p100
        %p273 = pneg %p124
        %p274 = pneg %p121
        %p275 = pneg %p145
        %p276 = pneg %p142
        %p277 = pneg %p166
        %p278 = pneg %p163
        %p279 = pneg %p192
        %p280 = pneg %p189
        %p281 = scmp.lt.s32.totalorder %s19, 1
        %s282 = scalar_select %p281, %s19, 1
        %s283 = smul.addr %s282, 8
        %s284 = smul.addr %s283, 8
        %s285 = scalar_lea.vmem %s7, %s284
        %p286 = scmp.lt.s32.totalorder %s19, 1
        %s287 = scalar_select %p286, %s19, 1
        %s288 = smul.addr %s287, 8
        %s289 = smul.addr %s288, 4
        %s290 = scalar_lea.vmem %s0, %s289
        %p291 = scmp.lt.s32.totalorder %s19, 1
        %s292 = scalar_select %p291, %s19, 1
        %s293 = smul.addr %s292, 8
        %s294 = smul.addr %s293, 8
        %s295 = scalar_lea.vmem %s7, %s294
        %v297 = vld [vmem:[%s290] sm:$0xf]
        %v298 = vld [vmem:[%s290 + $0x4] sm:$0xf]
        %v299 = vld [vmem:[%s290 + $0x8] sm:$0xf]
        %v300 = vld [vmem:[%s290 + $0xc] sm:$0xf]
        %v301 = vld [vmem:[%s290 + $0x10] sm:$0xf]
        %v302 = vld [vmem:[%s290 + $0x14] sm:$0xf]
        %v303 = vld [vmem:[%s290 + $0x18] sm:$0xf]
        %v304 = vld [vmem:[%s290 + $0x1c] sm:$0xf]
        %v305 = vld [vmem:[%s1] sm:$0xf]
        %v306 = vld [vmem:[%s1 + $0x4] sm:$0xf]
        %v307 = vld [vmem:[%s1 + $0x8] sm:$0xf]
        %v308 = vld [vmem:[%s1 + $0xc] sm:$0xf]
        %v309 = vld [vmem:[%s1 + $0x10] sm:$0x3]
        %v310 = vld [vmem:[%s2] sm:$0x1]
        %v312 = vperm.slane %v310, 0
        %v322 = vunpack.c.l.b16 %v297
        %v323 = vunpack.c.l.b16 %v298
        %v324 = vunpack.c.l.b16 %v299
        %v325 = vunpack.c.l.b16 %v300
        %v326 = vunpack.c.l.b16 %v301
        %v327 = vunpack.c.l.b16 %v302
        %v328 = vunpack.c.l.b16 %v303
        %v329 = vunpack.c.l.b16 %v304
        %v330 = vpack.c.b16 %v323, %v322
        %v331 = vpack.c.b16 %v325, %v324
        %v332 = vpack.c.b16 %v327, %v326
        %v333 = vpack.c.b16 %v329, %v328
        %v339 = vunpack.c.l.b16 %v305
        %v340 = vunpack.c.l.b16 %v306
        %v341 = vunpack.c.l.b16 %v307
        %v342 = vunpack.c.l.b16 %v308
        %v343 = vunpack.c.l.b16 %v309
        %v344 = vpack.c.b16 %v340, %v339
        %v345 = vpack.c.b16 %v342, %v341
        %v346 = vpack.c.b16 %v343, %v343
        %vm349 = vcmask 293888
        %v351 = vsel %vm349, %v330, 0
        %v354 = vsel %vm349, %v331, 0
        %v357 = vsel %vm349, %v332, 0
        %v360 = vsel %vm349, %v333, 0
        %vm362 = vcmask 1041408
        %v364 = vsel %vm362, %v346, 0
        %366 = vmatpush.bf16.msra.mxu0 0
        %367 = vmatpush.bf16.msra.mxu0 0
        %368 = vmatpush.bf16.msra.mxu0 0
        %369 = vmatpush.bf16.msra.mxu0 0
        %370 = vmatpush.bf16.msra.mxu0 0
        %371 = vmatpush.bf16.msra.mxu0 %v364
        %372 = vmatpush.bf16.msra.mxu0 %v345
        %373 = vmatpush.bf16.msra.mxu0 %v344
        %374 = vmatmul.bf16.gmra.mxu0 %v351
        %v375 = vpop.f32.mrf.mxu0
        %v376 = vadd.f32 %v312, %v375
        %v377 = vpop.f32.mrf.mxu0
        %v378 = vadd.f32 %v312, %v377
        %379 = vmatmul.bf16.gmra.mxu0 %v354
        %v380 = vpop.f32.mrf.mxu0
        %v381 = vadd.f32 %v312, %v380
        %v382 = vpop.f32.mrf.mxu0
        %v383 = vadd.f32 %v312, %v382
        %384 = vmatmul.bf16.gmra.mxu0 %v357
        %v385 = vpop.f32.mrf.mxu0
        %v386 = vadd.f32 %v312, %v385
        %v387 = vpop.f32.mrf.mxu0
        %v388 = vadd.f32 %v312, %v387
        %389 = vmatmul.bf16.gmra.mxu0 %v360
        %v390 = vpop.f32.mrf.mxu0
        %v391 = vadd.f32 %v312, %v390
        %v392 = vpop.f32.mrf.mxu0
        %v393 = vadd.f32 %v312, %v392
        %394 = vdwg.mxu0
        %vm395 = vcmp.ge.f32.partialorder %v376, 0.0
        %vm396 = vcmp.ge.f32.partialorder %v378, 0.0
        %vm397 = vcmp.ge.f32.partialorder %v381, 0.0
        %vm398 = vcmp.ge.f32.partialorder %v383, 0.0
        %vm399 = vcmp.ge.f32.partialorder %v386, 0.0
        %vm400 = vcmp.ge.f32.partialorder %v388, 0.0
        %vm401 = vcmp.ge.f32.partialorder %v391, 0.0
        %vm402 = vcmp.ge.f32.partialorder %v393, 0.0
        %v403 = vld [vmem:[%s3] sm:$0x1]
        %v405 = vperm.slane %v403, 0
        %v407 = vmul.f32 %v405, %v376
        %v408 = vmul.f32 %v405, %v378
        %v409 = vmul.f32 %v405, %v381
        %v410 = vmul.f32 %v405, %v383
        %v411 = vmul.f32 %v405, %v386
        %v412 = vmul.f32 %v405, %v388
        %v413 = vmul.f32 %v405, %v391
        %v414 = vmul.f32 %v405, %v393
        %v415 = vsel %vm395, %v376, %v407
        %v416 = vsel %vm396, %v378, %v408
        %v417 = vsel %vm397, %v381, %v409
        %v418 = vsel %vm398, %v383, %v410
        %v419 = vsel %vm399, %v386, %v411
        %v420 = vsel %vm400, %v388, %v412
        %v421 = vsel %vm401, %v391, %v413
        %v422 = vsel %vm402, %v393, %v414
        %423 = vst [vmem:[#allocation2] sm:$0xf] 0
        %424 = vst [vmem:[#allocation2 + $0x4] sm:$0x1] 0
        %425 = vst [vmem:[#allocation2 + $0x8] sm:$0xf] 0
        %426 = vst [vmem:[#allocation2 + $0xc] sm:$0x1] 0
        %427 = vst [vmem:[#allocation2 + $0x10] sm:$0xf] 0
        %428 = vst [vmem:[#allocation2 + $0x14] sm:$0x1] 0
        %429 = vst [vmem:[#allocation2 + $0x18] sm:$0xf] 0
        %430 = vst [vmem:[#allocation2 + $0x1c] sm:$0x1] 0
        %431 = vst [vmem:[#allocation2 + $0x20] sm:$0xf] 0
        %432 = vst [vmem:[#allocation2 + $0x24] sm:$0x1] 0
        %433 = vst [vmem:[#allocation2 + $0x28] sm:$0xf] 0
        %434 = vst [vmem:[#allocation2 + $0x2c] sm:$0x1] 0
        %435 = vst [vmem:[#allocation2 + $0x30] sm:$0xf] 0
        %436 = vst [vmem:[#allocation2 + $0x34] sm:$0x1] 0
        %437 = vst [vmem:[#allocation2 + $0x38] sm:$0xf] 0
        %438 = vst [vmem:[#allocation2 + $0x3c] sm:$0x1] 0
        %439 = vst [vmem:[#allocation2 + $0x40] sm:$0xf] 0
        %440 = vst [vmem:[#allocation2 + $0x44] sm:$0x1] 0
        %441 = vst [vmem:[#allocation2 + $0x48] sm:$0xf] 0
        %442 = vst [vmem:[#allocation2 + $0x4c] sm:$0x1] 0
        %v443 = vpack.c.bf16 %v415, %v415
        %v444 = vpack.c.bf16 %v416, %v416
        %v445 = vpack.c.bf16 %v417, %v417
        %v446 = vpack.c.bf16 %v418, %v418
        %v447 = vpack.c.bf16 %v419, %v419
        %v448 = vpack.c.bf16 %v420, %v420
        %v449 = vpack.c.bf16 %v421, %v421
        %v450 = vpack.c.bf16 %v422, %v422
        %v452 = vshrl.u32 %v443, 16
        %v454 = vrot.slane %v452, 7
        %v455 = vshll.u32 %v443, 16
        %v457 = vor.u32 %v454, %v455
        %v458 = vrot.slane %v454, 4
        %v460 = vshrl.u32 %v444, 16
        %v462 = vrot.slane %v460, 7
        %v463 = vshll.u32 %v444, 16
        %v465 = vor.u32 %v462, %v463
        %v466 = vrot.slane %v462, 4
        %v468 = vshrl.u32 %v445, 16
        %v470 = vrot.slane %v468, 7
        %v471 = vshll.u32 %v445, 16
        %v473 = vor.u32 %v470, %v471
        %v474 = vrot.slane %v470, 4
        %v476 = vshrl.u32 %v446, 16
        %v478 = vrot.slane %v476, 7
        %v479 = vshll.u32 %v446, 16
        %v481 = vor.u32 %v478, %v479
        %v482 = vrot.slane %v478, 4
        %v484 = vshrl.u32 %v447, 16
        %v486 = vrot.slane %v484, 7
        %v487 = vshll.u32 %v447, 16
        %v489 = vor.u32 %v486, %v487
        %v490 = vrot.slane %v486, 4
        %v492 = vshrl.u32 %v448, 16
        %v494 = vrot.slane %v492, 7
        %v495 = vshll.u32 %v448, 16
        %v497 = vor.u32 %v494, %v495
        %v498 = vrot.slane %v494, 4
        %v500 = vshrl.u32 %v449, 16
        %v502 = vrot.slane %v500, 7
        %v503 = vshll.u32 %v449, 16
        %v505 = vor.u32 %v502, %v503
        %v506 = vrot.slane %v502, 4
        %v508 = vshrl.u32 %v450, 16
        %v510 = vrot.slane %v508, 7
        %v511 = vshll.u32 %v450, 16
        %v513 = vor.u32 %v510, %v511
        %v514 = vrot.slane %v510, 4
        %s531 = scalar_lea.vmem [#allocation2], 8
        %vm532 = vcmask 1043456
        %vm533 = vsmask.f32 7938
        %vm534 = vmand %vm532, %vm533
        %v535 = vld [vmem:[%s531] sm:$0xf]
        %v536 = vsel %vm534, %v457, %v535
        %537 = vst [vmem:[%s531] sm:$0xf] %v536
        %vm538 = vcmask 1040384
        %vm539 = vsmask.f32 256
        %vm540 = vmand %vm538, %vm539
        %v541 = vld [vmem:[%s531 + $0x4] sm:$0x1]
        %v542 = vsel %vm540, %v458, %v541
        %543 = vst [vmem:[%s531 + $0x4] sm:$0x1] %v542
        %v544 = vld [vmem:[%s531 + $0x8] sm:$0xf]
        %v545 = vsel %vm534, %v465, %v544
        %546 = vst [vmem:[%s531 + $0x8] sm:$0xf] %v545
        %v547 = vld [vmem:[%s531 + $0xc] sm:$0x1]
        %v548 = vsel %vm540, %v466, %v547
        %549 = vst [vmem:[%s531 + $0xc] sm:$0x1] %v548
        %v550 = vld [vmem:[%s531 + $0x10] sm:$0xf]
        %v551 = vsel %vm534, %v473, %v550
        %552 = vst [vmem:[%s531 + $0x10] sm:$0xf] %v551
        %v553 = vld [vmem:[%s531 + $0x14] sm:$0x1]
        %v554 = vsel %vm540, %v474, %v553
        %555 = vst [vmem:[%s531 + $0x14] sm:$0x1] %v554
        %v556 = vld [vmem:[%s531 + $0x18] sm:$0xf]
        %v557 = vsel %vm534, %v481, %v556
        %558 = vst [vmem:[%s531 + $0x18] sm:$0xf] %v557
        %v559 = vld [vmem:[%s531 + $0x1c] sm:$0x1]
        %v560 = vsel %vm540, %v482, %v559
        %561 = vst [vmem:[%s531 + $0x1c] sm:$0x1] %v560
        %v562 = vld [vmem:[%s531 + $0x20] sm:$0xf]
        %v563 = vsel %vm534, %v489, %v562
        %564 = vst [vmem:[%s531 + $0x20] sm:$0xf] %v563
        %v565 = vld [vmem:[%s531 + $0x24] sm:$0x1]
        %v566 = vsel %vm540, %v490, %v565
        %567 = vst [vmem:[%s531 + $0x24] sm:$0x1] %v566
        %v568 = vld [vmem:[%s531 + $0x28] sm:$0xf]
        %v569 = vsel %vm534, %v497, %v568
        %570 = vst [vmem:[%s531 + $0x28] sm:$0xf] %v569
        %v571 = vld [vmem:[%s531 + $0x2c] sm:$0x1]
        %v572 = vsel %vm540, %v498, %v571
        %573 = vst [vmem:[%s531 + $0x2c] sm:$0x1] %v572
        %v574 = vld [vmem:[%s531 + $0x30] sm:$0xf]
        %v575 = vsel %vm534, %v505, %v574
        %576 = vst [vmem:[%s531 + $0x30] sm:$0xf] %v575
        %v577 = vld [vmem:[%s531 + $0x34] sm:$0x1]
        %v578 = vsel %vm540, %v506, %v577
        %579 = vst [vmem:[%s531 + $0x34] sm:$0x1] %v578
        %v580 = vld [vmem:[%s531 + $0x38] sm:$0xf]
        %v581 = vsel %vm534, %v513, %v580
        %582 = vst [vmem:[%s531 + $0x38] sm:$0xf] %v581
        %v583 = vld [vmem:[%s531 + $0x3c] sm:$0x1]
        %v584 = vsel %vm540, %v514, %v583
        %585 = vst [vmem:[%s531 + $0x3c] sm:$0x1] %v584
        %v586 = vld [vmem:[#allocation2] sm:$0xf]
        %v587 = vld [vmem:[#allocation2 + $0x8] sm:$0xf]
        %v588 = vld [vmem:[#allocation2 + $0x10] sm:$0xf]
        %v589 = vld [vmem:[#allocation2 + $0x18] sm:$0xf]
        %v590 = vld [vmem:[#allocation2 + $0x20] sm:$0xf]
        %v591 = vld [vmem:[#allocation2 + $0x28] sm:$0xf]
        %v592 = vld [vmem:[#allocation2 + $0x30] sm:$0xf]
        %v593 = vld [vmem:[#allocation2 + $0x38] sm:$0xf]
        %v594 = vld [vmem:[#allocation3] sm:$0xf]
        %v595 = vld [vmem:[#allocation3 + $0x4] sm:$0xf]
        %v596 = vld [vmem:[#allocation3 + $0x8] sm:$0xf]
        %v597 = vld [vmem:[#allocation3 + $0xc] sm:$0xf]
        %v598 = vld [vmem:[#allocation3 + $0x10] sm:$0xf]
        %v599 = vld [vmem:[#allocation3 + $0x14] sm:$0xf]
        %v600 = vld [vmem:[#allocation3 + $0x18] sm:$0xf]
        %v601 = vld [vmem:[#allocation3 + $0x1c] sm:$0xf]
        %v602 = vld [vmem:[#allocation3 + $0x20] sm:$0xf]
        %v603 = vld [vmem:[#allocation3 + $0x24] sm:$0xf]
        %v604 = vld [vmem:[#allocation3 + $0x28] sm:$0xf]
        %v605 = vld [vmem:[#allocation3 + $0x2c] sm:$0xf]
        %v606 = vld [vmem:[#allocation3 + $0x30] sm:$0xf]
        %v607 = vld [vmem:[#allocation3 + $0x34] sm:$0xf]
        %v608 = vld [vmem:[#allocation3 + $0x38] sm:$0xf]
        %v609 = vld [vmem:[#allocation3 + $0x3c] sm:$0xf]
        %v610 = vld [vmem:[#allocation2 + $0x4] sm:$0x1]
        %v611 = vld [vmem:[#allocation2 + $0xc] sm:$0x1]
        %v612 = vld [vmem:[#allocation2 + $0x14] sm:$0x1]
        %v613 = vld [vmem:[#allocation2 + $0x1c] sm:$0x1]
        %v614 = vld [vmem:[#allocation2 + $0x24] sm:$0x1]
        %v615 = vld [vmem:[#allocation2 + $0x2c] sm:$0x1]
        %v616 = vld [vmem:[#allocation2 + $0x34] sm:$0x1]
        %v617 = vld [vmem:[#allocation2 + $0x3c] sm:$0x1]
        %vm618 = vsmask.f32 3328
        %vm619 = vsmask.f32 7440
        %vm620 = vmor %vm618, %vm619
        %v622 = vshrl.u32 %v586, 16
        %v624 = vrot.slane %v622, 4
        %v625 = vshll.u32 %v586, 16
        %v627 = vrot.slane %v625, 5
        %v628 = vor.u32 %v624, %v627
        %v629 = vrot.slane %v628, 4
        %v631 = vshll.u32 %v610, 16
        %v633 = vrot.slane %v631, 5
        %v634 = vsel %vm620, %v629, %v633
        %v636 = vshrl.u32 %v587, 16
        %v638 = vrot.slane %v636, 4
        %v639 = vshll.u32 %v587, 16
        %v641 = vrot.slane %v639, 5
        %v642 = vor.u32 %v638, %v641
        %v643 = vrot.slane %v642, 4
        %v645 = vshll.u32 %v611, 16
        %v647 = vrot.slane %v645, 5
        %v648 = vsel %vm620, %v643, %v647
        %v650 = vshrl.u32 %v588, 16
        %v652 = vrot.slane %v650, 4
        %v653 = vshll.u32 %v588, 16
        %v655 = vrot.slane %v653, 5
        %v656 = vor.u32 %v652, %v655
        %v657 = vrot.slane %v656, 4
        %v659 = vshll.u32 %v612, 16
        %v661 = vrot.slane %v659, 5
        %v662 = vsel %vm620, %v657, %v661
        %v664 = vshrl.u32 %v589, 16
        %v666 = vrot.slane %v664, 4
        %v667 = vshll.u32 %v589, 16
        %v669 = vrot.slane %v667, 5
        %v670 = vor.u32 %v666, %v669
        %v671 = vrot.slane %v670, 4
        %v673 = vshll.u32 %v613, 16
        %v675 = vrot.slane %v673, 5
        %v676 = vsel %vm620, %v671, %v675
        %v678 = vshrl.u32 %v590, 16
        %v680 = vrot.slane %v678, 4
        %v681 = vshll.u32 %v590, 16
        %v683 = vrot.slane %v681, 5
        %v684 = vor.u32 %v680, %v683
        %v685 = vrot.slane %v684, 4
        %v687 = vshll.u32 %v614, 16
        %v689 = vrot.slane %v687, 5
        %v690 = vsel %vm620, %v685, %v689
        %v692 = vshrl.u32 %v591, 16
        %v694 = vrot.slane %v692, 4
        %v695 = vshll.u32 %v591, 16
        %v697 = vrot.slane %v695, 5
        %v698 = vor.u32 %v694, %v697
        %v699 = vrot.slane %v698, 4
        %v701 = vshll.u32 %v615, 16
        %v703 = vrot.slane %v701, 5
        %v704 = vsel %vm620, %v699, %v703
        %v706 = vshrl.u32 %v592, 16
        %v708 = vrot.slane %v706, 4
        %v709 = vshll.u32 %v592, 16
        %v711 = vrot.slane %v709, 5
        %v712 = vor.u32 %v708, %v711
        %v713 = vrot.slane %v712, 4
        %v715 = vshll.u32 %v616, 16
        %v717 = vrot.slane %v715, 5
        %v718 = vsel %vm620, %v713, %v717
        %v720 = vshrl.u32 %v593, 16
        %v722 = vrot.slane %v720, 4
        %v723 = vshll.u32 %v593, 16
        %v725 = vrot.slane %v723, 5
        %v726 = vor.u32 %v722, %v725
        %v727 = vrot.slane %v726, 4
        %v729 = vshll.u32 %v617, 16
        %v731 = vrot.slane %v729, 5
        %v732 = vsel %vm620, %v727, %v731
        %s733 = scalar_lea.vmem [#allocation3], 64
        %v734 = vld [vmem:[%s733] sm:$0xf]
        %v735 = vld [vmem:[%s733 + $0x4] sm:$0xf]
        %v736 = vld [vmem:[%s733 + $0x8] sm:$0xf]
        %v737 = vld [vmem:[%s733 + $0xc] sm:$0xf]
        %v738 = vld [vmem:[%s733 + $0x10] sm:$0xf]
        %v739 = vld [vmem:[%s733 + $0x14] sm:$0xf]
        %v740 = vld [vmem:[%s733 + $0x18] sm:$0xf]
        %v741 = vld [vmem:[%s733 + $0x1c] sm:$0xf]
        %v742 = vld [vmem:[%s733 + $0x20] sm:$0xf]
        %v743 = vld [vmem:[%s733 + $0x24] sm:$0xf]
        %v744 = vld [vmem:[%s733 + $0x28] sm:$0xf]
        %v745 = vld [vmem:[%s733 + $0x2c] sm:$0xf]
        %v746 = vld [vmem:[%s733 + $0x30] sm:$0xf]
        %v747 = vld [vmem:[%s733 + $0x34] sm:$0xf]
        %v748 = vld [vmem:[%s733 + $0x38] sm:$0xf]
        %v749 = vld [vmem:[%s733 + $0x3c] sm:$0xf]
        %v750 = vunpack.c.l.b16 %v634
        %v751 = vunpack.c.l.b16 %v648
        %v752 = vunpack.c.l.b16 %v662
        %v753 = vunpack.c.l.b16 %v676
        %v754 = vunpack.c.l.b16 %v690
        %v755 = vunpack.c.l.b16 %v704
        %v756 = vunpack.c.l.b16 %v718
        %v757 = vunpack.c.l.b16 %v732
        %v758 = vpack.c.b16 %v751, %v750
        %v759 = vpack.c.b16 %v753, %v752
        %v760 = vpack.c.b16 %v755, %v754
        %v761 = vpack.c.b16 %v757, %v756
        %v782 = vunpack.c.l.b16 %v734
        %v783 = vunpack.c.l.b16 %v735
        %v784 = vunpack.c.l.b16 %v736
        %v785 = vunpack.c.l.b16 %v737
        %v786 = vunpack.c.l.b16 %v738
        %v787 = vunpack.c.l.b16 %v739
        %v788 = vunpack.c.l.b16 %v740
        %v789 = vunpack.c.l.b16 %v741
        %v790 = vunpack.c.l.b16 %v742
        %v791 = vunpack.c.l.b16 %v743
        %v792 = vunpack.c.l.b16 %v744
        %v793 = vunpack.c.l.b16 %v745
        %v794 = vunpack.c.l.b16 %v746
        %v795 = vunpack.c.l.b16 %v747
        %v796 = vunpack.c.l.b16 %v748
        %v797 = vunpack.c.l.b16 %v749
        %v798 = vpack.c.b16 %v783, %v782
        %v799 = vpack.c.b16 %v785, %v784
        %v800 = vpack.c.b16 %v787, %v786
        %v801 = vpack.c.b16 %v789, %v788
        %v802 = vpack.c.b16 %v791, %v790
        %v803 = vpack.c.b16 %v793, %v792
        %v804 = vpack.c.b16 %v795, %v794
        %v805 = vpack.c.b16 %v797, %v796
        %814 = vmatpush.bf16.msra.mxu0 %v805
        %815 = vmatpush.bf16.msra.mxu0 %v804
        %816 = vmatpush.bf16.msra.mxu0 %v803
        %817 = vmatpush.bf16.msra.mxu0 %v802
        %818 = vmatpush.bf16.msra.mxu0 %v801
        %819 = vmatpush.bf16.msra.mxu0 %v800
        %820 = vmatpush.bf16.msra.mxu0 %v799
        %821 = vmatpush.bf16.msra.mxu0 %v798
        %822 = vmatmul.bf16.gmra.mxu0 %v758
        %v823 = vpop.f32.mrf.mxu0
        %v824 = vadd.f32 0.0, %v823
        %v825 = vpop.f32.mrf.mxu0
        %v826 = vadd.f32 0.0, %v825
        %827 = vmatmul.bf16.gmra.mxu0 %v759
        %v828 = vpop.f32.mrf.mxu0
        %v829 = vadd.f32 0.0, %v828
        %v830 = vpop.f32.mrf.mxu0
        %v831 = vadd.f32 0.0, %v830
        %832 = vmatmul.bf16.gmra.mxu0 %v760
        %v833 = vpop.f32.mrf.mxu0
        %v834 = vadd.f32 0.0, %v833
        %v835 = vpop.f32.mrf.mxu0
        %v836 = vadd.f32 0.0, %v835
        %837 = vmatmul.bf16.gmra.mxu0 %v761
        %v838 = vpop.f32.mrf.mxu0
        %v839 = vadd.f32 0.0, %v838
        %v840 = vpop.f32.mrf.mxu0
        %v841 = vadd.f32 0.0, %v840
        %842 = vdwg.mxu0
        %v851 = vunpack.c.l.b16 %v586
        %v852 = vunpack.c.l.b16 %v587
        %v853 = vunpack.c.l.b16 %v588
        %v854 = vunpack.c.l.b16 %v589
        %v855 = vunpack.c.l.b16 %v590
        %v856 = vunpack.c.l.b16 %v591
        %v857 = vunpack.c.l.b16 %v592
        %v858 = vunpack.c.l.b16 %v593
        %v859 = vpack.c.b16 %v852, %v851
        %v860 = vpack.c.b16 %v854, %v853
        %v861 = vpack.c.b16 %v856, %v855
        %v862 = vpack.c.b16 %v858, %v857
        %v883 = vunpack.c.l.b16 %v594
        %v884 = vunpack.c.l.b16 %v595
        %v885 = vunpack.c.l.b16 %v596
        %v886 = vunpack.c.l.b16 %v597
        %v887 = vunpack.c.l.b16 %v598
        %v888 = vunpack.c.l.b16 %v599
        %v889 = vunpack.c.l.b16 %v600
        %v890 = vunpack.c.l.b16 %v601
        %v891 = vunpack.c.l.b16 %v602
        %v892 = vunpack.c.l.b16 %v603
        %v893 = vunpack.c.l.b16 %v604
        %v894 = vunpack.c.l.b16 %v605
        %v895 = vunpack.c.l.b16 %v606
        %v896 = vunpack.c.l.b16 %v607
        %v897 = vunpack.c.l.b16 %v608
        %v898 = vunpack.c.l.b16 %v609
        %v899 = vpack.c.b16 %v884, %v883
        %v900 = vpack.c.b16 %v886, %v885
        %v901 = vpack.c.b16 %v888, %v887
        %v902 = vpack.c.b16 %v890, %v889
        %v903 = vpack.c.b16 %v892, %v891
        %v904 = vpack.c.b16 %v894, %v893
        %v905 = vpack.c.b16 %v896, %v895
        %v906 = vpack.c.b16 %v898, %v897
        %915 = vmatpush.bf16.msra.mxu0 %v906
        %916 = vmatpush.bf16.msra.mxu0 %v905
        %917 = vmatpush.bf16.msra.mxu0 %v904
        %918 = vmatpush.bf16.msra.mxu0 %v903
        %919 = vmatpush.bf16.msra.mxu0 %v902
        %920 = vmatpush.bf16.msra.mxu0 %v901
        %921 = vmatpush.bf16.msra.mxu0 %v900
        %922 = vmatpush.bf16.msra.mxu0 %v899
        %923 = vmatmul.bf16.gmra.mxu0 %v859
        %v924 = vpop.f32.mrf.mxu0
        %v925 = vadd.f32 %v824, %v924
        %v926 = vpop.f32.mrf.mxu0
        %v927 = vadd.f32 %v826, %v926
        %928 = vmatmul.bf16.gmra.mxu0 %v860
        %v929 = vpop.f32.mrf.mxu0
        %v930 = vadd.f32 %v829, %v929
        %v931 = vpop.f32.mrf.mxu0
        %v932 = vadd.f32 %v831, %v931
        %933 = vmatmul.bf16.gmra.mxu0 %v861
        %v934 = vpop.f32.mrf.mxu0
        %v935 = vadd.f32 %v834, %v934
        %v936 = vpop.f32.mrf.mxu0
        %v937 = vadd.f32 %v836, %v936
        %938 = vmatmul.bf16.gmra.mxu0 %v862
        %v939 = vpop.f32.mrf.mxu0
        %v940 = vadd.f32 %v839, %v939
        %v941 = vpop.f32.mrf.mxu0
        %v942 = vadd.f32 %v841, %v941
        %943 = vdwg.mxu0
        %v944 = vld [vmem:[#allocation2] sm:$0xe]
        %v945 = vld [vmem:[#allocation2 + $0x8] sm:$0xe]
        %v946 = vld [vmem:[#allocation2 + $0x10] sm:$0xe]
        %v947 = vld [vmem:[#allocation2 + $0x18] sm:$0xe]
        %v948 = vld [vmem:[#allocation2 + $0x20] sm:$0xe]
        %v949 = vld [vmem:[#allocation2 + $0x28] sm:$0xe]
        %v950 = vld [vmem:[#allocation2 + $0x30] sm:$0xe]
        %v951 = vld [vmem:[#allocation2 + $0x38] sm:$0xe]
        %vm968 = vcmask 1042432
        %vm969 = vcmask 1046532
        %vm970 = vmor %vm968, %vm969
        %v971 = vrot.slane %v944, 5
        %v972 = vrot.slane %v971, 4
        %v973 = vrot.slane %v610, 5
        %v974 = vsel %vm970, %v972, %v973
        %v975 = vrot.slane %v945, 5
        %v976 = vrot.slane %v975, 4
        %v977 = vrot.slane %v611, 5
        %v978 = vsel %vm970, %v976, %v977
        %v979 = vrot.slane %v946, 5
        %v980 = vrot.slane %v979, 4
        %v981 = vrot.slane %v612, 5
        %v982 = vsel %vm970, %v980, %v981
        %v983 = vrot.slane %v947, 5
        %v984 = vrot.slane %v983, 4
        %v985 = vrot.slane %v613, 5
        %v986 = vsel %vm970, %v984, %v985
        %v987 = vrot.slane %v948, 5
        %v988 = vrot.slane %v987, 4
        %v989 = vrot.slane %v614, 5
        %v990 = vsel %vm970, %v988, %v989
        %v991 = vrot.slane %v949, 5
        %v992 = vrot.slane %v991, 4
        %v993 = vrot.slane %v615, 5
        %v994 = vsel %vm970, %v992, %v993
        %v995 = vrot.slane %v950, 5
        %v996 = vrot.slane %v995, 4
        %v997 = vrot.slane %v616, 5
        %v998 = vsel %vm970, %v996, %v997
        %v999 = vrot.slane %v951, 5
        %v1000 = vrot.slane %v999, 4
        %v1001 = vrot.slane %v617, 5
        %v1002 = vsel %vm970, %v1000, %v1001
        %s1003 = scalar_lea.vmem [#allocation3], 128
        %v1004 = vld [vmem:[%s1003] sm:$0xf]
        %v1005 = vld [vmem:[%s1003 + $0x4] sm:$0xf]
        %v1006 = vld [vmem:[%s1003 + $0x8] sm:$0xf]
        %v1007 = vld [vmem:[%s1003 + $0xc] sm:$0xf]
        %v1008 = vld [vmem:[%s1003 + $0x10] sm:$0xf]
        %v1009 = vld [vmem:[%s1003 + $0x14] sm:$0xf]
        %v1010 = vld [vmem:[%s1003 + $0x18] sm:$0xf]
        %v1011 = vld [vmem:[%s1003 + $0x1c] sm:$0xf]
        %v1012 = vld [vmem:[%s1003 + $0x20] sm:$0xf]
        %v1013 = vld [vmem:[%s1003 + $0x24] sm:$0xf]
        %v1014 = vld [vmem:[%s1003 + $0x28] sm:$0xf]
        %v1015 = vld [vmem:[%s1003 + $0x2c] sm:$0xf]
        %v1016 = vld [vmem:[%s1003 + $0x30] sm:$0xf]
        %v1017 = vld [vmem:[%s1003 + $0x34] sm:$0xf]
        %v1018 = vld [vmem:[%s1003 + $0x38] sm:$0xf]
        %v1019 = vld [vmem:[%s1003 + $0x3c] sm:$0xf]
        %v1020 = vunpack.c.l.b16 %v974
        %v1021 = vunpack.c.l.b16 %v978
        %v1022 = vunpack.c.l.b16 %v982
        %v1023 = vunpack.c.l.b16 %v986
        %v1024 = vunpack.c.l.b16 %v990
        %v1025 = vunpack.c.l.b16 %v994
        %v1026 = vunpack.c.l.b16 %v998
        %v1027 = vunpack.c.l.b16 %v1002
        %v1028 = vpack.c.b16 %v1021, %v1020
        %v1029 = vpack.c.b16 %v1023, %v1022
        %v1030 = vpack.c.b16 %v1025, %v1024
        %v1031 = vpack.c.b16 %v1027, %v1026
        %v1052 = vunpack.c.l.b16 %v1004
        %v1053 = vunpack.c.l.b16 %v1005
        %v1054 = vunpack.c.l.b16 %v1006
        %v1055 = vunpack.c.l.b16 %v1007
        %v1056 = vunpack.c.l.b16 %v1008
        %v1057 = vunpack.c.l.b16 %v1009
        %v1058 = vunpack.c.l.b16 %v1010
        %v1059 = vunpack.c.l.b16 %v1011
        %v1060 = vunpack.c.l.b16 %v1012
        %v1061 = vunpack.c.l.b16 %v1013
        %v1062 = vunpack.c.l.b16 %v1014
        %v1063 = vunpack.c.l.b16 %v1015
        %v1064 = vunpack.c.l.b16 %v1016
        %v1065 = vunpack.c.l.b16 %v1017
        %v1066 = vunpack.c.l.b16 %v1018
        %v1067 = vunpack.c.l.b16 %v1019
        %v1068 = vpack.c.b16 %v1053, %v1052
        %v1069 = vpack.c.b16 %v1055, %v1054
        %v1070 = vpack.c.b16 %v1057, %v1056
        %v1071 = vpack.c.b16 %v1059, %v1058
        %v1072 = vpack.c.b16 %v1061, %v1060
        %v1073 = vpack.c.b16 %v1063, %v1062
        %v1074 = vpack.c.b16 %v1065, %v1064
        %v1075 = vpack.c.b16 %v1067, %v1066
        %1084 = vmatpush.bf16.msra.mxu0 %v1075
        %1085 = vmatpush.bf16.msra.mxu0 %v1074
        %1086 = vmatpush.bf16.msra.mxu0 %v1073
        %1087 = vmatpush.bf16.msra.mxu0 %v1072
        %1088 = vmatpush.bf16.msra.mxu0 %v1071
        %1089 = vmatpush.bf16.msra.mxu0 %v1070
        %1090 = vmatpush.bf16.msra.mxu0 %v1069
        %1091 = vmatpush.bf16.msra.mxu0 %v1068
        %1092 = vmatmul.bf16.gmra.mxu0 %v1028
        %v1093 = vpop.f32.mrf.mxu0
        %v1094 = vadd.f32 0.0, %v1093
        %v1095 = vpop.f32.mrf.mxu0
        %v1096 = vadd.f32 0.0, %v1095
        %1097 = vmatmul.bf16.gmra.mxu0 %v1029
        %v1098 = vpop.f32.mrf.mxu0
        %v1099 = vadd.f32 0.0, %v1098
        %v1100 = vpop.f32.mrf.mxu0
        %v1101 = vadd.f32 0.0, %v1100
        %1102 = vmatmul.bf16.gmra.mxu0 %v1030
        %v1103 = vpop.f32.mrf.mxu0
        %v1104 = vadd.f32 0.0, %v1103
        %v1105 = vpop.f32.mrf.mxu0
        %v1106 = vadd.f32 0.0, %v1105
        %1107 = vmatmul.bf16.gmra.mxu0 %v1031
        %v1108 = vpop.f32.mrf.mxu0
        %v1109 = vadd.f32 0.0, %v1108
        %v1110 = vpop.f32.mrf.mxu0
        %v1111 = vadd.f32 0.0, %v1110
        %1112 = vdwg.mxu0
        %v1113 = vadd.f32 %v925, %v1094
        %v1114 = vadd.f32 %v927, %v1096
        %v1115 = vadd.f32 %v930, %v1099
        %v1116 = vadd.f32 %v932, %v1101
        %v1117 = vadd.f32 %v935, %v1104
        %v1118 = vadd.f32 %v937, %v1106
        %v1119 = vadd.f32 %v940, %v1109
        %v1120 = vadd.f32 %v942, %v1111
        %v1121 = vld [vmem:[%s531] sm:$0xf]
        %v1122 = vld [vmem:[%s531 + $0x8] sm:$0xf]
        %v1123 = vld [vmem:[%s531 + $0x10] sm:$0xf]
        %v1124 = vld [vmem:[%s531 + $0x18] sm:$0xf]
        %v1125 = vld [vmem:[%s531 + $0x20] sm:$0xf]
        %v1126 = vld [vmem:[%s531 + $0x28] sm:$0xf]
        %v1127 = vld [vmem:[%s531 + $0x30] sm:$0xf]
        %v1128 = vld [vmem:[%s531 + $0x38] sm:$0xf]
        %s1129 = scalar_lea.vmem [#allocation3], 192
        %v1130 = vld [vmem:[%s1129] sm:$0xf]
        %v1131 = vld [vmem:[%s1129 + $0x4] sm:$0xf]
        %v1132 = vld [vmem:[%s1129 + $0x8] sm:$0xf]
        %v1133 = vld [vmem:[%s1129 + $0xc] sm:$0xf]
        %v1134 = vld [vmem:[%s1129 + $0x10] sm:$0xf]
        %v1135 = vld [vmem:[%s1129 + $0x14] sm:$0xf]
        %v1136 = vld [vmem:[%s1129 + $0x18] sm:$0xf]
        %v1137 = vld [vmem:[%s1129 + $0x1c] sm:$0xf]
        %v1138 = vld [vmem:[%s1129 + $0x20] sm:$0xf]
        %v1139 = vld [vmem:[%s1129 + $0x24] sm:$0xf]
        %v1140 = vld [vmem:[%s1129 + $0x28] sm:$0xf]
        %v1141 = vld [vmem:[%s1129 + $0x2c] sm:$0xf]
        %v1142 = vld [vmem:[%s1129 + $0x30] sm:$0xf]
        %v1143 = vld [vmem:[%s1129 + $0x34] sm:$0xf]
        %v1144 = vld [vmem:[%s1129 + $0x38] sm:$0xf]
        %v1145 = vld [vmem:[%s1129 + $0x3c] sm:$0xf]
        %v1154 = vunpack.c.l.b16 %v1121
        %v1155 = vunpack.c.l.b16 %v1122
        %v1156 = vunpack.c.l.b16 %v1123
        %v1157 = vunpack.c.l.b16 %v1124
        %v1158 = vunpack.c.l.b16 %v1125
        %v1159 = vunpack.c.l.b16 %v1126
        %v1160 = vunpack.c.l.b16 %v1127
        %v1161 = vunpack.c.l.b16 %v1128
        %v1162 = vpack.c.b16 %v1155, %v1154
        %v1163 = vpack.c.b16 %v1157, %v1156
        %v1164 = vpack.c.b16 %v1159, %v1158
        %v1165 = vpack.c.b16 %v1161, %v1160
        %v1186 = vunpack.c.l.b16 %v1130
        %v1187 = vunpack.c.l.b16 %v1131
        %v1188 = vunpack.c.l.b16 %v1132
        %v1189 = vunpack.c.l.b16 %v1133
        %v1190 = vunpack.c.l.b16 %v1134
        %v1191 = vunpack.c.l.b16 %v1135
        %v1192 = vunpack.c.l.b16 %v1136
        %v1193 = vunpack.c.l.b16 %v1137
        %v1194 = vunpack.c.l.b16 %v1138
        %v1195 = vunpack.c.l.b16 %v1139
        %v1196 = vunpack.c.l.b16 %v1140
        %v1197 = vunpack.c.l.b16 %v1141
        %v1198 = vunpack.c.l.b16 %v1142
        %v1199 = vunpack.c.l.b16 %v1143
        %v1200 = vunpack.c.l.b16 %v1144
        %v1201 = vunpack.c.l.b16 %v1145
        %v1202 = vpack.c.b16 %v1187, %v1186
        %v1203 = vpack.c.b16 %v1189, %v1188
        %v1204 = vpack.c.b16 %v1191, %v1190
        %v1205 = vpack.c.b16 %v1193, %v1192
        %v1206 = vpack.c.b16 %v1195, %v1194
        %v1207 = vpack.c.b16 %v1197, %v1196
        %v1208 = vpack.c.b16 %v1199, %v1198
        %v1209 = vpack.c.b16 %v1201, %v1200
        %1218 = vmatpush.bf16.msra.mxu0 %v1209
        %1219 = vmatpush.bf16.msra.mxu0 %v1208
        %1220 = vmatpush.bf16.msra.mxu0 %v1207
        %1221 = vmatpush.bf16.msra.mxu0 %v1206
        %1222 = vmatpush.bf16.msra.mxu0 %v1205
        %1223 = vmatpush.bf16.msra.mxu0 %v1204
        %1224 = vmatpush.bf16.msra.mxu0 %v1203
        %1225 = vmatpush.bf16.msra.mxu0 %v1202
        %1226 = vmatmul.bf16.gmra.mxu0 %v1162
        %v1227 = vpop.f32.mrf.mxu0
        %v1228 = vadd.f32 0.0, %v1227
        %v1229 = vpop.f32.mrf.mxu0
        %v1230 = vadd.f32 0.0, %v1229
        %1231 = vmatmul.bf16.gmra.mxu0 %v1163
        %v1232 = vpop.f32.mrf.mxu0
        %v1233 = vadd.f32 0.0, %v1232
        %v1234 = vpop.f32.mrf.mxu0
        %v1235 = vadd.f32 0.0, %v1234
        %1236 = vmatmul.bf16.gmra.mxu0 %v1164
        %v1237 = vpop.f32.mrf.mxu0
        %v1238 = vadd.f32 0.0, %v1237
        %v1239 = vpop.f32.mrf.mxu0
        %v1240 = vadd.f32 0.0, %v1239
        %1241 = vmatmul.bf16.gmra.mxu0 %v1165
        %v1242 = vpop.f32.mrf.mxu0
        %v1243 = vadd.f32 0.0, %v1242
        %v1244 = vpop.f32.mrf.mxu0
        %v1245 = vadd.f32 0.0, %v1244
        %1246 = vdwg.mxu0
        %v1247 = vadd.f32 %v1113, %v1228
        %v1248 = vadd.f32 %v1114, %v1230
        %v1249 = vadd.f32 %v1115, %v1233
        %v1250 = vadd.f32 %v1116, %v1235
        %v1251 = vadd.f32 %v1117, %v1238
        %v1252 = vadd.f32 %v1118, %v1240
        %v1253 = vadd.f32 %v1119, %v1243
        %v1254 = vadd.f32 %v1120, %v1245
        %v1255 = vld [vmem:[%s531] sm:$0xf]
        %v1256 = vld [vmem:[%s531 + $0x4] sm:$0x1]
        %v1257 = vld [vmem:[%s531 + $0x8] sm:$0xf]
        %v1258 = vld [vmem:[%s531 + $0xc] sm:$0x1]
        %v1259 = vld [vmem:[%s531 + $0x10] sm:$0xf]
        %v1260 = vld [vmem:[%s531 + $0x14] sm:$0x1]
        %v1261 = vld [vmem:[%s531 + $0x18] sm:$0xf]
        %v1262 = vld [vmem:[%s531 + $0x1c] sm:$0x1]
        %v1263 = vld [vmem:[%s531 + $0x20] sm:$0xf]
        %v1264 = vld [vmem:[%s531 + $0x24] sm:$0x1]
        %v1265 = vld [vmem:[%s531 + $0x28] sm:$0xf]
        %v1266 = vld [vmem:[%s531 + $0x2c] sm:$0x1]
        %v1267 = vld [vmem:[%s531 + $0x30] sm:$0xf]
        %v1268 = vld [vmem:[%s531 + $0x34] sm:$0x1]
        %v1269 = vld [vmem:[%s531 + $0x38] sm:$0xf]
        %v1270 = vld [vmem:[%s531 + $0x3c] sm:$0x1]
        %v1272 = vshrl.u32 %v1255, 16
        %v1274 = vrot.slane %v1272, 4
        %v1275 = vshll.u32 %v1255, 16
        %v1277 = vrot.slane %v1275, 5
        %v1278 = vor.u32 %v1274, %v1277
        %v1279 = vrot.slane %v1278, 4
        %v1281 = vshll.u32 %v1256, 16
        %v1283 = vrot.slane %v1281, 5
        %v1284 = vsel %vm620, %v1279, %v1283
        %v1286 = vshrl.u32 %v1257, 16
        %v1288 = vrot.slane %v1286, 4
        %v1289 = vshll.u32 %v1257, 16
        %v1291 = vrot.slane %v1289, 5
        %v1292 = vor.u32 %v1288, %v1291
        %v1293 = vrot.slane %v1292, 4
        %v1295 = vshll.u32 %v1258, 16
        %v1297 = vrot.slane %v1295, 5
        %v1298 = vsel %vm620, %v1293, %v1297
        %v1300 = vshrl.u32 %v1259, 16
        %v1302 = vrot.slane %v1300, 4
        %v1303 = vshll.u32 %v1259, 16
        %v1305 = vrot.slane %v1303, 5
        %v1306 = vor.u32 %v1302, %v1305
        %v1307 = vrot.slane %v1306, 4
        %v1309 = vshll.u32 %v1260, 16
        %v1311 = vrot.slane %v1309, 5
        %v1312 = vsel %vm620, %v1307, %v1311
        %v1314 = vshrl.u32 %v1261, 16
        %v1316 = vrot.slane %v1314, 4
        %v1317 = vshll.u32 %v1261, 16
        %v1319 = vrot.slane %v1317, 5
        %v1320 = vor.u32 %v1316, %v1319
        %v1321 = vrot.slane %v1320, 4
        %v1323 = vshll.u32 %v1262, 16
        %v1325 = vrot.slane %v1323, 5
        %v1326 = vsel %vm620, %v1321, %v1325
        %v1328 = vshrl.u32 %v1263, 16
        %v1330 = vrot.slane %v1328, 4
        %v1331 = vshll.u32 %v1263, 16
        %v1333 = vrot.slane %v1331, 5
        %v1334 = vor.u32 %v1330, %v1333
        %v1335 = vrot.slane %v1334, 4
        %v1337 = vshll.u32 %v1264, 16
        %v1339 = vrot.slane %v1337, 5
        %v1340 = vsel %vm620, %v1335, %v1339
        %v1342 = vshrl.u32 %v1265, 16
        %v1344 = vrot.slane %v1342, 4
        %v1345 = vshll.u32 %v1265, 16
        %v1347 = vrot.slane %v1345, 5
        %v1348 = vor.u32 %v1344, %v1347
        %v1349 = vrot.slane %v1348, 4
        %v1351 = vshll.u32 %v1266, 16
        %v1353 = vrot.slane %v1351, 5
        %v1354 = vsel %vm620, %v1349, %v1353
        %v1356 = vshrl.u32 %v1267, 16
        %v1358 = vrot.slane %v1356, 4
        %v1359 = vshll.u32 %v1267, 16
        %v1361 = vrot.slane %v1359, 5
        %v1362 = vor.u32 %v1358, %v1361
        %v1363 = vrot.slane %v1362, 4
        %v1365 = vshll.u32 %v1268, 16
        %v1367 = vrot.slane %v1365, 5
        %v1368 = vsel %vm620, %v1363, %v1367
        %v1370 = vshrl.u32 %v1269, 16
        %v1372 = vrot.slane %v1370, 4
        %v1373 = vshll.u32 %v1269, 16
        %v1375 = vrot.slane %v1373, 5
        %v1376 = vor.u32 %v1372, %v1375
        %v1377 = vrot.slane %v1376, 4
        %v1379 = vshll.u32 %v1270, 16
        %v1381 = vrot.slane %v1379, 5
        %v1382 = vsel %vm620, %v1377, %v1381
        %s1383 = scalar_lea.vmem [#allocation3], 256
        %v1384 = vld [vmem:[%s1383] sm:$0xf]
        %v1385 = vld [vmem:[%s1383 + $0x4] sm:$0xf]
        %v1386 = vld [vmem:[%s1383 + $0x8] sm:$0xf]
        %v1387 = vld [vmem:[%s1383 + $0xc] sm:$0xf]
        %v1388 = vld [vmem:[%s1383 + $0x10] sm:$0xf]
        %v1389 = vld [vmem:[%s1383 + $0x14] sm:$0xf]
        %v1390 = vld [vmem:[%s1383 + $0x18] sm:$0xf]
        %v1391 = vld [vmem:[%s1383 + $0x1c] sm:$0xf]
        %v1392 = vld [vmem:[%s1383 + $0x20] sm:$0xf]
        %v1393 = vld [vmem:[%s1383 + $0x24] sm:$0xf]
        %v1394 = vld [vmem:[%s1383 + $0x28] sm:$0xf]
        %v1395 = vld [vmem:[%s1383 + $0x2c] sm:$0xf]
        %v1396 = vld [vmem:[%s1383 + $0x30] sm:$0xf]
        %v1397 = vld [vmem:[%s1383 + $0x34] sm:$0xf]
        %v1398 = vld [vmem:[%s1383 + $0x38] sm:$0xf]
        %v1399 = vld [vmem:[%s1383 + $0x3c] sm:$0xf]
        %v1400 = vunpack.c.l.b16 %v1284
        %v1401 = vunpack.c.l.b16 %v1298
        %v1402 = vunpack.c.l.b16 %v1312
        %v1403 = vunpack.c.l.b16 %v1326
        %v1404 = vunpack.c.l.b16 %v1340
        %v1405 = vunpack.c.l.b16 %v1354
        %v1406 = vunpack.c.l.b16 %v1368
        %v1407 = vunpack.c.l.b16 %v1382
        %v1408 = vpack.c.b16 %v1401, %v1400
        %v1409 = vpack.c.b16 %v1403, %v1402
        %v1410 = vpack.c.b16 %v1405, %v1404
        %v1411 = vpack.c.b16 %v1407, %v1406
        %v1432 = vunpack.c.l.b16 %v1384
        %v1433 = vunpack.c.l.b16 %v1385
        %v1434 = vunpack.c.l.b16 %v1386
        %v1435 = vunpack.c.l.b16 %v1387
        %v1436 = vunpack.c.l.b16 %v1388
        %v1437 = vunpack.c.l.b16 %v1389
        %v1438 = vunpack.c.l.b16 %v1390
        %v1439 = vunpack.c.l.b16 %v1391
        %v1440 = vunpack.c.l.b16 %v1392
        %v1441 = vunpack.c.l.b16 %v1393
        %v1442 = vunpack.c.l.b16 %v1394
        %v1443 = vunpack.c.l.b16 %v1395
        %v1444 = vunpack.c.l.b16 %v1396
        %v1445 = vunpack.c.l.b16 %v1397
        %v1446 = vunpack.c.l.b16 %v1398
        %v1447 = vunpack.c.l.b16 %v1399
        %v1448 = vpack.c.b16 %v1433, %v1432
        %v1449 = vpack.c.b16 %v1435, %v1434
        %v1450 = vpack.c.b16 %v1437, %v1436
        %v1451 = vpack.c.b16 %v1439, %v1438
        %v1452 = vpack.c.b16 %v1441, %v1440
        %v1453 = vpack.c.b16 %v1443, %v1442
        %v1454 = vpack.c.b16 %v1445, %v1444
        %v1455 = vpack.c.b16 %v1447, %v1446
        %1464 = vmatpush.bf16.msra.mxu0 %v1455
        %1465 = vmatpush.bf16.msra.mxu0 %v1454
        %1466 = vmatpush.bf16.msra.mxu0 %v1453
        %1467 = vmatpush.bf16.msra.mxu0 %v1452
        %1468 = vmatpush.bf16.msra.mxu0 %v1451
        %1469 = vmatpush.bf16.msra.mxu0 %v1450
        %1470 = vmatpush.bf16.msra.mxu0 %v1449
        %1471 = vmatpush.bf16.msra.mxu0 %v1448
        %1472 = vmatmul.bf16.gmra.mxu0 %v1408
        %v1473 = vpop.f32.mrf.mxu0
        %v1474 = vadd.f32 0.0, %v1473
        %v1475 = vpop.f32.mrf.mxu0
        %v1476 = vadd.f32 0.0, %v1475
        %1477 = vmatmul.bf16.gmra.mxu0 %v1409
        %v1478 = vpop.f32.mrf.mxu0
        %v1479 = vadd.f32 0.0, %v1478
        %v1480 = vpop.f32.mrf.mxu0
        %v1481 = vadd.f32 0.0, %v1480
        %1482 = vmatmul.bf16.gmra.mxu0 %v1410
        %v1483 = vpop.f32.mrf.mxu0
        %v1484 = vadd.f32 0.0, %v1483
        %v1485 = vpop.f32.mrf.mxu0
        %v1486 = vadd.f32 0.0, %v1485
        %1487 = vmatmul.bf16.gmra.mxu0 %v1411
        %v1488 = vpop.f32.mrf.mxu0
        %v1489 = vadd.f32 0.0, %v1488
        %v1490 = vpop.f32.mrf.mxu0
        %v1491 = vadd.f32 0.0, %v1490
        %1492 = vdwg.mxu0
        %v1493 = vadd.f32 %v1247, %v1474
        %v1494 = vadd.f32 %v1248, %v1476
        %v1495 = vadd.f32 %v1249, %v1479
        %v1496 = vadd.f32 %v1250, %v1481
        %v1497 = vadd.f32 %v1251, %v1484
        %v1498 = vadd.f32 %v1252, %v1486
        %v1499 = vadd.f32 %v1253, %v1489
        %v1500 = vadd.f32 %v1254, %v1491
        %v1501 = vld [vmem:[%s531] sm:$0xe]
        %v1502 = vld [vmem:[%s531 + $0x8] sm:$0xe]
        %v1503 = vld [vmem:[%s531 + $0x10] sm:$0xe]
        %v1504 = vld [vmem:[%s531 + $0x18] sm:$0xe]
        %v1505 = vld [vmem:[%s531 + $0x20] sm:$0xe]
        %v1506 = vld [vmem:[%s531 + $0x28] sm:$0xe]
        %v1507 = vld [vmem:[%s531 + $0x30] sm:$0xe]
        %v1508 = vld [vmem:[%s531 + $0x38] sm:$0xe]
        %v1525 = vrot.slane %v1501, 5
        %v1526 = vrot.slane %v1525, 4
        %v1527 = vrot.slane %v1256, 5
        %v1528 = vsel %vm970, %v1526, %v1527
        %v1529 = vrot.slane %v1502, 5
        %v1530 = vrot.slane %v1529, 4
        %v1531 = vrot.slane %v1258, 5
        %v1532 = vsel %vm970, %v1530, %v1531
        %v1533 = vrot.slane %v1503, 5
        %v1534 = vrot.slane %v1533, 4
        %v1535 = vrot.slane %v1260, 5
        %v1536 = vsel %vm970, %v1534, %v1535
        %v1537 = vrot.slane %v1504, 5
        %v1538 = vrot.slane %v1537, 4
        %v1539 = vrot.slane %v1262, 5
        %v1540 = vsel %vm970, %v1538, %v1539
        %v1541 = vrot.slane %v1505, 5
        %v1542 = vrot.slane %v1541, 4
        %v1543 = vrot.slane %v1264, 5
        %v1544 = vsel %vm970, %v1542, %v1543
        %v1545 = vrot.slane %v1506, 5
        %v1546 = vrot.slane %v1545, 4
        %v1547 = vrot.slane %v1266, 5
        %v1548 = vsel %vm970, %v1546, %v1547
        %v1549 = vrot.slane %v1507, 5
        %v1550 = vrot.slane %v1549, 4
        %v1551 = vrot.slane %v1268, 5
        %v1552 = vsel %vm970, %v1550, %v1551
        %v1553 = vrot.slane %v1508, 5
        %v1554 = vrot.slane %v1553, 4
        %v1555 = vrot.slane %v1270, 5
        %v1556 = vsel %vm970, %v1554, %v1555
        %s1557 = scalar_lea.vmem [#allocation3], 320
        %v1558 = vld [vmem:[%s1557] sm:$0xf]
        %v1559 = vld [vmem:[%s1557 + $0x4] sm:$0xf]
        %v1560 = vld [vmem:[%s1557 + $0x8] sm:$0xf]
        %v1561 = vld [vmem:[%s1557 + $0xc] sm:$0xf]
        %v1562 = vld [vmem:[%s1557 + $0x10] sm:$0xf]
        %v1563 = vld [vmem:[%s1557 + $0x14] sm:$0xf]
        %v1564 = vld [vmem:[%s1557 + $0x18] sm:$0xf]
        %v1565 = vld [vmem:[%s1557 + $0x1c] sm:$0xf]
        %v1566 = vld [vmem:[%s1557 + $0x20] sm:$0xf]
        %v1567 = vld [vmem:[%s1557 + $0x24] sm:$0xf]
        %v1568 = vld [vmem:[%s1557 + $0x28] sm:$0xf]
        %v1569 = vld [vmem:[%s1557 + $0x2c] sm:$0xf]
        %v1570 = vld [vmem:[%s1557 + $0x30] sm:$0xf]
        %v1571 = vld [vmem:[%s1557 + $0x34] sm:$0xf]
        %v1572 = vld [vmem:[%s1557 + $0x38] sm:$0xf]
        %v1573 = vld [vmem:[%s1557 + $0x3c] sm:$0xf]
        %v1574 = vunpack.c.l.b16 %v1528
        %v1575 = vunpack.c.l.b16 %v1532
        %v1576 = vunpack.c.l.b16 %v1536
        %v1577 = vunpack.c.l.b16 %v1540
        %v1578 = vunpack.c.l.b16 %v1544
        %v1579 = vunpack.c.l.b16 %v1548
        %v1580 = vunpack.c.l.b16 %v1552
        %v1581 = vunpack.c.l.b16 %v1556
        %v1582 = vpack.c.b16 %v1575, %v1574
        %v1583 = vpack.c.b16 %v1577, %v1576
        %v1584 = vpack.c.b16 %v1579, %v1578
        %v1585 = vpack.c.b16 %v1581, %v1580
        %v1606 = vunpack.c.l.b16 %v1558
        %v1607 = vunpack.c.l.b16 %v1559
        %v1608 = vunpack.c.l.b16 %v1560
        %v1609 = vunpack.c.l.b16 %v1561
        %v1610 = vunpack.c.l.b16 %v1562
        %v1611 = vunpack.c.l.b16 %v1563
        %v1612 = vunpack.c.l.b16 %v1564
        %v1613 = vunpack.c.l.b16 %v1565
        %v1614 = vunpack.c.l.b16 %v1566
        %v1615 = vunpack.c.l.b16 %v1567
        %v1616 = vunpack.c.l.b16 %v1568
        %v1617 = vunpack.c.l.b16 %v1569
        %v1618 = vunpack.c.l.b16 %v1570
        %v1619 = vunpack.c.l.b16 %v1571
        %v1620 = vunpack.c.l.b16 %v1572
        %v1621 = vunpack.c.l.b16 %v1573
        %v1622 = vpack.c.b16 %v1607, %v1606
        %v1623 = vpack.c.b16 %v1609, %v1608
        %v1624 = vpack.c.b16 %v1611, %v1610
        %v1625 = vpack.c.b16 %v1613, %v1612
        %v1626 = vpack.c.b16 %v1615, %v1614
        %v1627 = vpack.c.b16 %v1617, %v1616
        %v1628 = vpack.c.b16 %v1619, %v1618
        %v1629 = vpack.c.b16 %v1621, %v1620
        %1638 = vmatpush.bf16.msra.mxu0 %v1629
        %1639 = vmatpush.bf16.msra.mxu0 %v1628
        %1640 = vmatpush.bf16.msra.mxu0 %v1627
        %1641 = vmatpush.bf16.msra.mxu0 %v1626
        %1642 = vmatpush.bf16.msra.mxu0 %v1625
        %1643 = vmatpush.bf16.msra.mxu0 %v1624
        %1644 = vmatpush.bf16.msra.mxu0 %v1623
        %1645 = vmatpush.bf16.msra.mxu0 %v1622
        %1646 = vmatmul.bf16.gmra.mxu0 %v1582
        %v1647 = vpop.f32.mrf.mxu0
        %v1648 = vadd.f32 0.0, %v1647
        %v1649 = vpop.f32.mrf.mxu0
        %v1650 = vadd.f32 0.0, %v1649
        %1651 = vmatmul.bf16.gmra.mxu0 %v1583
        %v1652 = vpop.f32.mrf.mxu0
        %v1653 = vadd.f32 0.0, %v1652
        %v1654 = vpop.f32.mrf.mxu0
        %v1655 = vadd.f32 0.0, %v1654
        %1656 = vmatmul.bf16.gmra.mxu0 %v1584
        %v1657 = vpop.f32.mrf.mxu0
        %v1658 = vadd.f32 0.0, %v1657
        %v1659 = vpop.f32.mrf.mxu0
        %v1660 = vadd.f32 0.0, %v1659
        %1661 = vmatmul.bf16.gmra.mxu0 %v1585
        %v1662 = vpop.f32.mrf.mxu0
        %v1663 = vadd.f32 0.0, %v1662
        %v1664 = vpop.f32.mrf.mxu0
        %v1665 = vadd.f32 0.0, %v1664
        %1666 = vdwg.mxu0
        %v1667 = vadd.f32 %v1493, %v1648
        %v1668 = vadd.f32 %v1494, %v1650
        %v1669 = vadd.f32 %v1495, %v1653
        %v1670 = vadd.f32 %v1496, %v1655
        %v1671 = vadd.f32 %v1497, %v1658
        %v1672 = vadd.f32 %v1498, %v1660
        %v1673 = vadd.f32 %v1499, %v1663
        %v1674 = vadd.f32 %v1500, %v1665
        %s1675 = scalar_lea.vmem [#allocation2], 16
        %v1676 = vld [vmem:[%s1675] sm:$0xf]
        %v1677 = vld [vmem:[%s1675 + $0x8] sm:$0xf]
        %v1678 = vld [vmem:[%s1675 + $0x10] sm:$0xf]
        %v1679 = vld [vmem:[%s1675 + $0x18] sm:$0xf]
        %v1680 = vld [vmem:[%s1675 + $0x20] sm:$0xf]
        %v1681 = vld [vmem:[%s1675 + $0x28] sm:$0xf]
        %v1682 = vld [vmem:[%s1675 + $0x30] sm:$0xf]
        %v1683 = vld [vmem:[%s1675 + $0x38] sm:$0xf]
        %s1684 = scalar_lea.vmem [#allocation3], 384
        %v1685 = vld [vmem:[%s1684] sm:$0xf]
        %v1686 = vld [vmem:[%s1684 + $0x4] sm:$0xf]
        %v1687 = vld [vmem:[%s1684 + $0x8] sm:$0xf]
        %v1688 = vld [vmem:[%s1684 + $0xc] sm:$0xf]
        %v1689 = vld [vmem:[%s1684 + $0x10] sm:$0xf]
        %v1690 = vld [vmem:[%s1684 + $0x14] sm:$0xf]
        %v1691 = vld [vmem:[%s1684 + $0x18] sm:$0xf]
        %v1692 = vld [vmem:[%s1684 + $0x1c] sm:$0xf]
        %v1693 = vld [vmem:[%s1684 + $0x20] sm:$0xf]
        %v1694 = vld [vmem:[%s1684 + $0x24] sm:$0xf]
        %v1695 = vld [vmem:[%s1684 + $0x28] sm:$0xf]
        %v1696 = vld [vmem:[%s1684 + $0x2c] sm:$0xf]
        %v1697 = vld [vmem:[%s1684 + $0x30] sm:$0xf]
        %v1698 = vld [vmem:[%s1684 + $0x34] sm:$0xf]
        %v1699 = vld [vmem:[%s1684 + $0x38] sm:$0xf]
        %v1700 = vld [vmem:[%s1684 + $0x3c] sm:$0xf]
        %v1709 = vunpack.c.l.b16 %v1676
        %v1710 = vunpack.c.l.b16 %v1677
        %v1711 = vunpack.c.l.b16 %v1678
        %v1712 = vunpack.c.l.b16 %v1679
        %v1713 = vunpack.c.l.b16 %v1680
        %v1714 = vunpack.c.l.b16 %v1681
        %v1715 = vunpack.c.l.b16 %v1682
        %v1716 = vunpack.c.l.b16 %v1683
        %v1717 = vpack.c.b16 %v1710, %v1709
        %v1718 = vpack.c.b16 %v1712, %v1711
        %v1719 = vpack.c.b16 %v1714, %v1713
        %v1720 = vpack.c.b16 %v1716, %v1715
        %v1741 = vunpack.c.l.b16 %v1685
        %v1742 = vunpack.c.l.b16 %v1686
        %v1743 = vunpack.c.l.b16 %v1687
        %v1744 = vunpack.c.l.b16 %v1688
        %v1745 = vunpack.c.l.b16 %v1689
        %v1746 = vunpack.c.l.b16 %v1690
        %v1747 = vunpack.c.l.b16 %v1691
        %v1748 = vunpack.c.l.b16 %v1692
        %v1749 = vunpack.c.l.b16 %v1693
        %v1750 = vunpack.c.l.b16 %v1694
        %v1751 = vunpack.c.l.b16 %v1695
        %v1752 = vunpack.c.l.b16 %v1696
        %v1753 = vunpack.c.l.b16 %v1697
        %v1754 = vunpack.c.l.b16 %v1698
        %v1755 = vunpack.c.l.b16 %v1699
        %v1756 = vunpack.c.l.b16 %v1700
        %v1757 = vpack.c.b16 %v1742, %v1741
        %v1758 = vpack.c.b16 %v1744, %v1743
        %v1759 = vpack.c.b16 %v1746, %v1745
        %v1760 = vpack.c.b16 %v1748, %v1747
        %v1761 = vpack.c.b16 %v1750, %v1749
        %v1762 = vpack.c.b16 %v1752, %v1751
        %v1763 = vpack.c.b16 %v1754, %v1753
        %v1764 = vpack.c.b16 %v1756, %v1755
        %1773 = vmatpush.bf16.msra.mxu0 %v1764
        %1774 = vmatpush.bf16.msra.mxu0 %v1763
        %1775 = vmatpush.bf16.msra.mxu0 %v1762
        %1776 = vmatpush.bf16.msra.mxu0 %v1761
        %1777 = vmatpush.bf16.msra.mxu0 %v1760
        %1778 = vmatpush.bf16.msra.mxu0 %v1759
        %1779 = vmatpush.bf16.msra.mxu0 %v1758
        %1780 = vmatpush.bf16.msra.mxu0 %v1757
        %1781 = vmatmul.bf16.gmra.mxu0 %v1717
        %v1782 = vpop.f32.mrf.mxu0
        %v1783 = vadd.f32 0.0, %v1782
        %v1784 = vpop.f32.mrf.mxu0
        %v1785 = vadd.f32 0.0, %v1784
        %1786 = vmatmul.bf16.gmra.mxu0 %v1718
        %v1787 = vpop.f32.mrf.mxu0
        %v1788 = vadd.f32 0.0, %v1787
        %v1789 = vpop.f32.mrf.mxu0
        %v1790 = vadd.f32 0.0, %v1789
        %1791 = vmatmul.bf16.gmra.mxu0 %v1719
        %v1792 = vpop.f32.mrf.mxu0
        %v1793 = vadd.f32 0.0, %v1792
        %v1794 = vpop.f32.mrf.mxu0
        %v1795 = vadd.f32 0.0, %v1794
        %1796 = vmatmul.bf16.gmra.mxu0 %v1720
        %v1797 = vpop.f32.mrf.mxu0
        %v1798 = vadd.f32 0.0, %v1797
        %v1799 = vpop.f32.mrf.mxu0
        %v1800 = vadd.f32 0.0, %v1799
        %1801 = vdwg.mxu0
        %v1802 = vadd.f32 %v1667, %v1783
        %v1803 = vadd.f32 %v1668, %v1785
        %v1804 = vadd.f32 %v1669, %v1788
        %v1805 = vadd.f32 %v1670, %v1790
        %v1806 = vadd.f32 %v1671, %v1793
        %v1807 = vadd.f32 %v1672, %v1795
        %v1808 = vadd.f32 %v1673, %v1798
        %v1809 = vadd.f32 %v1674, %v1800
        %v1810 = vld [vmem:[%s1675] sm:$0xf]
        %v1811 = vld [vmem:[%s1675 + $0x4] sm:$0x1]
        %v1812 = vld [vmem:[%s1675 + $0x8] sm:$0xf]
        %v1813 = vld [vmem:[%s1675 + $0xc] sm:$0x1]
        %v1814 = vld [vmem:[%s1675 + $0x10] sm:$0xf]
        %v1815 = vld [vmem:[%s1675 + $0x14] sm:$0x1]
        %v1816 = vld [vmem:[%s1675 + $0x18] sm:$0xf]
        %v1817 = vld [vmem:[%s1675 + $0x1c] sm:$0x1]
        %v1818 = vld [vmem:[%s1675 + $0x20] sm:$0xf]
        %v1819 = vld [vmem:[%s1675 + $0x24] sm:$0x1]
        %v1820 = vld [vmem:[%s1675 + $0x28] sm:$0xf]
        %v1821 = vld [vmem:[%s1675 + $0x2c] sm:$0x1]
        %v1822 = vld [vmem:[%s1675 + $0x30] sm:$0xf]
        %v1823 = vld [vmem:[%s1675 + $0x34] sm:$0x1]
        %v1824 = vld [vmem:[%s1675 + $0x38] sm:$0xf]
        %v1825 = vld [vmem:[%s1675 + $0x3c] sm:$0x1]
        %v1827 = vshrl.u32 %v1810, 16
        %v1829 = vrot.slane %v1827, 4
        %v1830 = vshll.u32 %v1810, 16
        %v1832 = vrot.slane %v1830, 5
        %v1833 = vor.u32 %v1829, %v1832
        %v1834 = vrot.slane %v1833, 4
        %v1836 = vshll.u32 %v1811, 16
        %v1838 = vrot.slane %v1836, 5
        %v1839 = vsel %vm620, %v1834, %v1838
        %v1841 = vshrl.u32 %v1812, 16
        %v1843 = vrot.slane %v1841, 4
        %v1844 = vshll.u32 %v1812, 16
        %v1846 = vrot.slane %v1844, 5
        %v1847 = vor.u32 %v1843, %v1846
        %v1848 = vrot.slane %v1847, 4
        %v1850 = vshll.u32 %v1813, 16
        %v1852 = vrot.slane %v1850, 5
        %v1853 = vsel %vm620, %v1848, %v1852
        %v1855 = vshrl.u32 %v1814, 16
        %v1857 = vrot.slane %v1855, 4
        %v1858 = vshll.u32 %v1814, 16
        %v1860 = vrot.slane %v1858, 5
        %v1861 = vor.u32 %v1857, %v1860
        %v1862 = vrot.slane %v1861, 4
        %v1864 = vshll.u32 %v1815, 16
        %v1866 = vrot.slane %v1864, 5
        %v1867 = vsel %vm620, %v1862, %v1866
        %v1869 = vshrl.u32 %v1816, 16
        %v1871 = vrot.slane %v1869, 4
        %v1872 = vshll.u32 %v1816, 16
        %v1874 = vrot.slane %v1872, 5
        %v1875 = vor.u32 %v1871, %v1874
        %v1876 = vrot.slane %v1875, 4
        %v1878 = vshll.u32 %v1817, 16
        %v1880 = vrot.slane %v1878, 5
        %v1881 = vsel %vm620, %v1876, %v1880
        %v1883 = vshrl.u32 %v1818, 16
        %v1885 = vrot.slane %v1883, 4
        %v1886 = vshll.u32 %v1818, 16
        %v1888 = vrot.slane %v1886, 5
        %v1889 = vor.u32 %v1885, %v1888
        %v1890 = vrot.slane %v1889, 4
        %v1892 = vshll.u32 %v1819, 16
        %v1894 = vrot.slane %v1892, 5
        %v1895 = vsel %vm620, %v1890, %v1894
        %v1897 = vshrl.u32 %v1820, 16
        %v1899 = vrot.slane %v1897, 4
        %v1900 = vshll.u32 %v1820, 16
        %v1902 = vrot.slane %v1900, 5
        %v1903 = vor.u32 %v1899, %v1902
        %v1904 = vrot.slane %v1903, 4
        %v1906 = vshll.u32 %v1821, 16
        %v1908 = vrot.slane %v1906, 5
        %v1909 = vsel %vm620, %v1904, %v1908
        %v1911 = vshrl.u32 %v1822, 16
        %v1913 = vrot.slane %v1911, 4
        %v1914 = vshll.u32 %v1822, 16
        %v1916 = vrot.slane %v1914, 5
        %v1917 = vor.u32 %v1913, %v1916
        %v1918 = vrot.slane %v1917, 4
        %v1920 = vshll.u32 %v1823, 16
        %v1922 = vrot.slane %v1920, 5
        %v1923 = vsel %vm620, %v1918, %v1922
        %v1925 = vshrl.u32 %v1824, 16
        %v1927 = vrot.slane %v1925, 4
        %v1928 = vshll.u32 %v1824, 16
        %v1930 = vrot.slane %v1928, 5
        %v1931 = vor.u32 %v1927, %v1930
        %v1932 = vrot.slane %v1931, 4
        %v1934 = vshll.u32 %v1825, 16
        %v1936 = vrot.slane %v1934, 5
        %v1937 = vsel %vm620, %v1932, %v1936
        %s1938 = scalar_lea.vmem [#allocation3], 448
        %v1939 = vld [vmem:[%s1938] sm:$0xf]
        %v1940 = vld [vmem:[%s1938 + $0x4] sm:$0xf]
        %v1941 = vld [vmem:[%s1938 + $0x8] sm:$0xf]
        %v1942 = vld [vmem:[%s1938 + $0xc] sm:$0xf]
        %v1943 = vld [vmem:[%s1938 + $0x10] sm:$0xf]
        %v1944 = vld [vmem:[%s1938 + $0x14] sm:$0xf]
        %v1945 = vld [vmem:[%s1938 + $0x18] sm:$0xf]
        %v1946 = vld [vmem:[%s1938 + $0x1c] sm:$0xf]
        %v1947 = vld [vmem:[%s1938 + $0x20] sm:$0xf]
        %v1948 = vld [vmem:[%s1938 + $0x24] sm:$0xf]
        %v1949 = vld [vmem:[%s1938 + $0x28] sm:$0xf]
        %v1950 = vld [vmem:[%s1938 + $0x2c] sm:$0xf]
        %v1951 = vld [vmem:[%s1938 + $0x30] sm:$0xf]
        %v1952 = vld [vmem:[%s1938 + $0x34] sm:$0xf]
        %v1953 = vld [vmem:[%s1938 + $0x38] sm:$0xf]
        %v1954 = vld [vmem:[%s1938 + $0x3c] sm:$0xf]
        %v1955 = vunpack.c.l.b16 %v1839
        %v1956 = vunpack.c.l.b16 %v1853
        %v1957 = vunpack.c.l.b16 %v1867
        %v1958 = vunpack.c.l.b16 %v1881
        %v1959 = vunpack.c.l.b16 %v1895
        %v1960 = vunpack.c.l.b16 %v1909
        %v1961 = vunpack.c.l.b16 %v1923
        %v1962 = vunpack.c.l.b16 %v1937
        %v1963 = vpack.c.b16 %v1956, %v1955
        %v1964 = vpack.c.b16 %v1958, %v1957
        %v1965 = vpack.c.b16 %v1960, %v1959
        %v1966 = vpack.c.b16 %v1962, %v1961
        %v1987 = vunpack.c.l.b16 %v1939
        %v1988 = vunpack.c.l.b16 %v1940
        %v1989 = vunpack.c.l.b16 %v1941
        %v1990 = vunpack.c.l.b16 %v1942
        %v1991 = vunpack.c.l.b16 %v1943
        %v1992 = vunpack.c.l.b16 %v1944
        %v1993 = vunpack.c.l.b16 %v1945
        %v1994 = vunpack.c.l.b16 %v1946
        %v1995 = vunpack.c.l.b16 %v1947
        %v1996 = vunpack.c.l.b16 %v1948
        %v1997 = vunpack.c.l.b16 %v1949
        %v1998 = vunpack.c.l.b16 %v1950
        %v1999 = vunpack.c.l.b16 %v1951
        %v2000 = vunpack.c.l.b16 %v1952
        %v2001 = vunpack.c.l.b16 %v1953
        %v2002 = vunpack.c.l.b16 %v1954
        %v2003 = vpack.c.b16 %v1988, %v1987
        %v2004 = vpack.c.b16 %v1990, %v1989
        %v2005 = vpack.c.b16 %v1992, %v1991
        %v2006 = vpack.c.b16 %v1994, %v1993
        %v2007 = vpack.c.b16 %v1996, %v1995
        %v2008 = vpack.c.b16 %v1998, %v1997
        %v2009 = vpack.c.b16 %v2000, %v1999
        %v2010 = vpack.c.b16 %v2002, %v2001
        %2019 = vmatpush.bf16.msra.mxu0 %v2010
        %2020 = vmatpush.bf16.msra.mxu0 %v2009
        %2021 = vmatpush.bf16.msra.mxu0 %v2008
        %2022 = vmatpush.bf16.msra.mxu0 %v2007
        %2023 = vmatpush.bf16.msra.mxu0 %v2006
        %2024 = vmatpush.bf16.msra.mxu0 %v2005
        %2025 = vmatpush.bf16.msra.mxu0 %v2004
        %2026 = vmatpush.bf16.msra.mxu0 %v2003
        %2027 = vmatmul.bf16.gmra.mxu0 %v1963
        %v2028 = vpop.f32.mrf.mxu0
        %v2029 = vadd.f32 0.0, %v2028
        %v2030 = vpop.f32.mrf.mxu0
        %v2031 = vadd.f32 0.0, %v2030
        %2032 = vmatmul.bf16.gmra.mxu0 %v1964
        %v2033 = vpop.f32.mrf.mxu0
        %v2034 = vadd.f32 0.0, %v2033
        %v2035 = vpop.f32.mrf.mxu0
        %v2036 = vadd.f32 0.0, %v2035
        %2037 = vmatmul.bf16.gmra.mxu0 %v1965
        %v2038 = vpop.f32.mrf.mxu0
        %v2039 = vadd.f32 0.0, %v2038
        %v2040 = vpop.f32.mrf.mxu0
        %v2041 = vadd.f32 0.0, %v2040
        %2042 = vmatmul.bf16.gmra.mxu0 %v1966
        %v2043 = vpop.f32.mrf.mxu0
        %v2044 = vadd.f32 0.0, %v2043
        %v2045 = vpop.f32.mrf.mxu0
        %v2046 = vadd.f32 0.0, %v2045
        %2047 = vdwg.mxu0
        %v2048 = vadd.f32 %v1802, %v2029
        %v2049 = vadd.f32 %v1803, %v2031
        %v2050 = vadd.f32 %v1804, %v2034
        %v2051 = vadd.f32 %v1805, %v2036
        %v2052 = vadd.f32 %v1806, %v2039
        %v2053 = vadd.f32 %v1807, %v2041
        %v2054 = vadd.f32 %v1808, %v2044
        %v2055 = vadd.f32 %v1809, %v2046
        %v2056 = vld [vmem:[%s1675] sm:$0xe]
        %v2057 = vld [vmem:[%s1675 + $0x8] sm:$0xe]
        %v2058 = vld [vmem:[%s1675 + $0x10] sm:$0xe]
        %v2059 = vld [vmem:[%s1675 + $0x18] sm:$0xe]
        %v2060 = vld [vmem:[%s1675 + $0x20] sm:$0xe]
        %v2061 = vld [vmem:[%s1675 + $0x28] sm:$0xe]
        %v2062 = vld [vmem:[%s1675 + $0x30] sm:$0xe]
        %v2063 = vld [vmem:[%s1675 + $0x38] sm:$0xe]
        %v2080 = vrot.slane %v2056, 5
        %v2081 = vrot.slane %v2080, 4
        %v2082 = vrot.slane %v1811, 5
        %v2083 = vsel %vm970, %v2081, %v2082
        %v2084 = vrot.slane %v2057, 5
        %v2085 = vrot.slane %v2084, 4
        %v2086 = vrot.slane %v1813, 5
        %v2087 = vsel %vm970, %v2085, %v2086
        %v2088 = vrot.slane %v2058, 5
        %v2089 = vrot.slane %v2088, 4
        %v2090 = vrot.slane %v1815, 5
        %v2091 = vsel %vm970, %v2089, %v2090
        %v2092 = vrot.slane %v2059, 5
        %v2093 = vrot.slane %v2092, 4
        %v2094 = vrot.slane %v1817, 5
        %v2095 = vsel %vm970, %v2093, %v2094
        %v2096 = vrot.slane %v2060, 5
        %v2097 = vrot.slane %v2096, 4
        %v2098 = vrot.slane %v1819, 5
        %v2099 = vsel %vm970, %v2097, %v2098
        %v2100 = vrot.slane %v2061, 5
        %v2101 = vrot.slane %v2100, 4
        %v2102 = vrot.slane %v1821, 5
        %v2103 = vsel %vm970, %v2101, %v2102
        %v2104 = vrot.slane %v2062, 5
        %v2105 = vrot.slane %v2104, 4
        %v2106 = vrot.slane %v1823, 5
        %v2107 = vsel %vm970, %v2105, %v2106
        %v2108 = vrot.slane %v2063, 5
        %v2109 = vrot.slane %v2108, 4
        %v2110 = vrot.slane %v1825, 5
        %v2111 = vsel %vm970, %v2109, %v2110
        %s2112 = scalar_lea.vmem [#allocation3], 512
        %v2113 = vld [vmem:[%s2112] sm:$0xf]
        %v2114 = vld [vmem:[%s2112 + $0x4] sm:$0xf]
        %v2115 = vld [vmem:[%s2112 + $0x8] sm:$0xf]
        %v2116 = vld [vmem:[%s2112 + $0xc] sm:$0xf]
        %v2117 = vld [vmem:[%s2112 + $0x10] sm:$0xf]
        %v2118 = vld [vmem:[%s2112 + $0x14] sm:$0xf]
        %v2119 = vld [vmem:[%s2112 + $0x18] sm:$0xf]
        %v2120 = vld [vmem:[%s2112 + $0x1c] sm:$0xf]
        %v2121 = vld [vmem:[%s2112 + $0x20] sm:$0xf]
        %v2122 = vld [vmem:[%s2112 + $0x24] sm:$0xf]
        %v2123 = vld [vmem:[%s2112 + $0x28] sm:$0xf]
        %v2124 = vld [vmem:[%s2112 + $0x2c] sm:$0xf]
        %v2125 = vld [vmem:[%s2112 + $0x30] sm:$0xf]
        %v2126 = vld [vmem:[%s2112 + $0x34] sm:$0xf]
        %v2127 = vld [vmem:[%s2112 + $0x38] sm:$0xf]
        %v2128 = vld [vmem:[%s2112 + $0x3c] sm:$0xf]
        %v2129 = vunpack.c.l.b16 %v2083
        %v2130 = vunpack.c.l.b16 %v2087
        %v2131 = vunpack.c.l.b16 %v2091
        %v2132 = vunpack.c.l.b16 %v2095
        %v2133 = vunpack.c.l.b16 %v2099
        %v2134 = vunpack.c.l.b16 %v2103
        %v2135 = vunpack.c.l.b16 %v2107
        %v2136 = vunpack.c.l.b16 %v2111
        %v2137 = vpack.c.b16 %v2130, %v2129
        %v2138 = vpack.c.b16 %v2132, %v2131
        %v2139 = vpack.c.b16 %v2134, %v2133
        %v2140 = vpack.c.b16 %v2136, %v2135
        %v2161 = vunpack.c.l.b16 %v2113
        %v2162 = vunpack.c.l.b16 %v2114
        %v2163 = vunpack.c.l.b16 %v2115
        %v2164 = vunpack.c.l.b16 %v2116
        %v2165 = vunpack.c.l.b16 %v2117
        %v2166 = vunpack.c.l.b16 %v2118
        %v2167 = vunpack.c.l.b16 %v2119
        %v2168 = vunpack.c.l.b16 %v2120
        %v2169 = vunpack.c.l.b16 %v2121
        %v2170 = vunpack.c.l.b16 %v2122
        %v2171 = vunpack.c.l.b16 %v2123
        %v2172 = vunpack.c.l.b16 %v2124
        %v2173 = vunpack.c.l.b16 %v2125
        %v2174 = vunpack.c.l.b16 %v2126
        %v2175 = vunpack.c.l.b16 %v2127
        %v2176 = vunpack.c.l.b16 %v2128
        %v2177 = vpack.c.b16 %v2162, %v2161
        %v2178 = vpack.c.b16 %v2164, %v2163
        %v2179 = vpack.c.b16 %v2166, %v2165
        %v2180 = vpack.c.b16 %v2168, %v2167
        %v2181 = vpack.c.b16 %v2170, %v2169
        %v2182 = vpack.c.b16 %v2172, %v2171
        %v2183 = vpack.c.b16 %v2174, %v2173
        %v2184 = vpack.c.b16 %v2176, %v2175
        %2193 = vmatpush.bf16.msra.mxu0 %v2184
        %2194 = vmatpush.bf16.msra.mxu0 %v2183
        %2195 = vmatpush.bf16.msra.mxu0 %v2182
        %2196 = vmatpush.bf16.msra.mxu0 %v2181
        %2197 = vmatpush.bf16.msra.mxu0 %v2180
        %2198 = vmatpush.bf16.msra.mxu0 %v2179
        %2199 = vmatpush.bf16.msra.mxu0 %v2178
        %2200 = vmatpush.bf16.msra.mxu0 %v2177
        %2201 = vmatmul.bf16.gmra.mxu0 %v2137
        %v2202 = vpop.f32.mrf.mxu0
        %v2203 = vadd.f32 0.0, %v2202
        %v2204 = vpop.f32.mrf.mxu0
        %v2205 = vadd.f32 0.0, %v2204
        %2206 = vmatmul.bf16.gmra.mxu0 %v2138
        %v2207 = vpop.f32.mrf.mxu0
        %v2208 = vadd.f32 0.0, %v2207
        %v2209 = vpop.f32.mrf.mxu0
        %v2210 = vadd.f32 0.0, %v2209
        %2211 = vmatmul.bf16.gmra.mxu0 %v2139
        %v2212 = vpop.f32.mrf.mxu0
        %v2213 = vadd.f32 0.0, %v2212
        %v2214 = vpop.f32.mrf.mxu0
        %v2215 = vadd.f32 0.0, %v2214
        %2216 = vmatmul.bf16.gmra.mxu0 %v2140
        %v2217 = vpop.f32.mrf.mxu0
        %v2218 = vadd.f32 0.0, %v2217
        %v2219 = vpop.f32.mrf.mxu0
        %v2220 = vadd.f32 0.0, %v2219
        %2221 = vdwg.mxu0
        %v2222 = vadd.f32 %v2048, %v2203
        %v2223 = vadd.f32 %v2049, %v2205
        %v2224 = vadd.f32 %v2050, %v2208
        %v2225 = vadd.f32 %v2051, %v2210
        %v2226 = vadd.f32 %v2052, %v2213
        %v2227 = vadd.f32 %v2053, %v2215
        %v2228 = vadd.f32 %v2054, %v2218
        %v2229 = vadd.f32 %v2055, %v2220
        %v2230 = vld [vmem:[%s5] sm:$0x1]
        %v2232 = vperm.slane %v2230, 0
        %v2234 = vadd.f32 %v2222, %v2232
        %v2235 = vadd.f32 %v2223, %v2232
        %v2236 = vadd.f32 %v2224, %v2232
        %v2237 = vadd.f32 %v2225, %v2232
        %v2238 = vadd.f32 %v2226, %v2232
        %v2239 = vadd.f32 %v2227, %v2232
        %v2240 = vadd.f32 %v2228, %v2232
        %v2241 = vadd.f32 %v2229, %v2232
        %vm2242 = vcmp.ge.f32.partialorder %v2234, 0.0
        %vm2243 = vcmp.ge.f32.partialorder %v2235, 0.0
        %vm2244 = vcmp.ge.f32.partialorder %v2236, 0.0
        %vm2245 = vcmp.ge.f32.partialorder %v2237, 0.0
        %vm2246 = vcmp.ge.f32.partialorder %v2238, 0.0
        %vm2247 = vcmp.ge.f32.partialorder %v2239, 0.0
        %vm2248 = vcmp.ge.f32.partialorder %v2240, 0.0
        %vm2249 = vcmp.ge.f32.partialorder %v2241, 0.0
        %v2250 = vld [vmem:[%s6] sm:$0x1]
        %v2252 = vperm.slane %v2250, 0
        %v2254 = vmul.f32 %v2252, %v2234
        %v2255 = vmul.f32 %v2252, %v2235
        %v2256 = vmul.f32 %v2252, %v2236
        %v2257 = vmul.f32 %v2252, %v2237
        %v2258 = vmul.f32 %v2252, %v2238
        %v2259 = vmul.f32 %v2252, %v2239
        %v2260 = vmul.f32 %v2252, %v2240
        %v2261 = vmul.f32 %v2252, %v2241
        %v2262 = vsel %vm2242, %v2234, %v2254
        %v2263 = vsel %vm2243, %v2235, %v2255
        %v2264 = vsel %vm2244, %v2236, %v2256
        %v2265 = vsel %vm2245, %v2237, %v2257
        %v2266 = vsel %vm2246, %v2238, %v2258
        %v2267 = vsel %vm2247, %v2239, %v2259
        %v2268 = vsel %vm2248, %v2240, %v2260
        %v2269 = vsel %vm2249, %v2241, %v2261
        %vm2270 = vcmask 64512
        %2271 = vst.msk [vmem:[%s295] sm:$0xff] %vm2270, %v2262
        %2272 = vst.msk [vmem:[%s295 + $0x8] sm:$0xff] %vm2270, %v2263
        %2273 = vst.msk [vmem:[%s295 + $0x10] sm:$0xff] %vm2270, %v2264
        %2274 = vst.msk [vmem:[%s295 + $0x18] sm:$0xff] %vm2270, %v2265
        %2275 = vst.msk [vmem:[%s295 + $0x20] sm:$0xff] %vm2270, %v2266
        %2276 = vst.msk [vmem:[%s295 + $0x28] sm:$0xff] %vm2270, %v2267
        %2277 = vst.msk [vmem:[%s295 + $0x30] sm:$0xff] %vm2270, %v2268
        %2278 = vst.msk [vmem:[%s295 + $0x38] sm:$0xff] %vm2270, %v2269
        %p2279 = scmp.lt.s32.totalorder %s19, 1
        %s2280 = scalar_select %p2279, %s19, 1
        %s2281 = smul.addr %s2280, 8
        %s2282 = smul.addr %s2281, 8
        %s2283 = scalar_lea.vmem %s7, %s2282
        // Predicated region
        $region53: #{tpu_custom_call.1} parent=47 // pred_check
          %p2284 = pneg %p189
        $region54: #{tpu_custom_call.1} parent=47 // pred_check_branch
          %2286 = sbr.rel (%p2284) target = $region56
        $region55: #{tpu_custom_call.1} parent=47 // pred_region
          _
        $region56: #{tpu_custom_call.1} parent=47 // pred_fallthru
          _
      $region48: #{tpu_custom_call.1} parent=5 // pred_fallthru
        _
      %p2287 = scmp.le.s32.totalorder 2, %s14
      // Predicated region
      $region57: #{tpu_custom_call.1} parent=5 // pred_check
        %p2288 = pneg %p2287
      $region58: #{tpu_custom_call.1} parent=5 // pred_check_branch
        %2290 = sbr.rel (%p2288) target = $region60
      $region59: #{tpu_custom_call.1} parent=5 // pred_region
        %s2291 = ssub.s32 %s14, 2
        // Predicated region
        $region61: #{tpu_custom_call.1} parent=59 // pred_check
          %p2292 = pneg %p195
        $region62: #{tpu_custom_call.1} parent=59 // pred_check_branch
          %2294 = sbr.rel (%p2292) target = $region64
        $region63: #{tpu_custom_call.1} parent=59 // pred_region
          %p2295 = scmp.lt.s32.totalorder %s20, 1
          %s2296 = scalar_select %p2295, %s20, 1
          %s2297 = smul.addr %s2296, 8
          %s2298 = smul.addr %s2297, 8
          %s2299 = scalar_lea.vmem %s7, %s2298
        $region64: #{tpu_custom_call.1} parent=59 // pred_fallthru
          _
      $region60: #{tpu_custom_call.1} parent=5 // pred_fallthru
        _
    $region6: #{tpu_custom_call.1} parent=1 // loop_footer
      %s18 = sadd.s32 1, %s14
    $region7: #{tpu_custom_call.1} parent=1 // loop_footer_branch
      %13 = sbr.rel target = $region3
    $region8: #{tpu_custom_call.1} parent=1 // loop_exit
      _
    %2300 = vsyncpa [#allocation4], 1
    %s2301 = scalar_lea.sflag [#allocation4], 1
    %2302 = vsyncpa %s2301, 1

</llo_original>
